<compile_context>
chip_gen: v5e
topology: v5e:2x2
jax: 0.10.0
libtpu: 0.0.40
codegen_flags: <defaults>
</compile_context>

<pallas_src>
import functools

import jax
import jax.numpy as jnp
from jax.experimental import pallas as pl
from jax.experimental.pallas import tpu as pltpu

BN_EPS = 1e-5
LANE = 128
_VMEM_LIMIT = 32 * 1024 * 1024  # safe on v5e/v6e/v7x for this tiling


# ---------------------------------------------------------------------------
# Kernel 1: one GIN layer up to (but not including) its BatchNorm.
#   t = ReLU( ReLU( (A' @ (h*scale+shift)) @ Wa + ba ) @ Wb + bb )
# plus per-row-tile partial BN statistics (sum, sum of squares).
# Grid = (row tiles [parallel], K tiles [arbitrary / reduction]).
# ---------------------------------------------------------------------------
def gin_layer_kernel(adj_ref, h_ref, scale_ref, shift_ref,
                     wa_ref, ba_ref, wb_ref, bb_ref,
                     t_ref, sum_ref, sq_ref, acc_ref,
                     *, n_valid, tile_n):
    i = pl.program_id(0)
    k = pl.program_id(1)

    @pl.when(k == 0)
    def _init():
        acc_ref[...] = jnp.zeros_like(acc_ref)

    # Previous layer's BatchNorm fused as a per-feature affine; cast the MXU
    # operand to bf16 (adjacency entries are small integers -> exact).
    h = h_ref[...] * scale_ref[...] + shift_ref[...]
    acc_ref[...] += jnp.dot(adj_ref[...], h.astype(jnp.bfloat16),
                            preferred_element_type=jnp.float32)

    @pl.when(k == pl.num_programs(1) - 1)
    def _finalize():
        agg = acc_ref[...]
        t = jnp.dot(agg.astype(jnp.bfloat16), wa_ref[...],
                    preferred_element_type=jnp.float32) + ba_ref[...]
        t = jnp.maximum(t, 0.0)
        t = jnp.dot(t.astype(jnp.bfloat16), wb_ref[...],
                    preferred_element_type=jnp.float32) + bb_ref[...]
        t = jnp.maximum(t, 0.0)
        t_ref[...] = t

        # Partial BatchNorm statistics for this row tile; padded rows masked.
        rows = jax.lax.broadcasted_iota(jnp.int32, t.shape, 0) + i * tile_n
        tm = jnp.where(rows < n_valid, t, 0.0)
        sum_ref[...] = jnp.sum(tm, axis=0, keepdims=True)[None]
        sq_ref[...] = jnp.sum(tm * tm, axis=0, keepdims=True)[None]


# ---------------------------------------------------------------------------
# Kernel 2: global mean pool (per layer) + final Linear, with the concat
# replaced by a split weight:
#   out = sum_i (P @ t_i * scale_i + shift_i) @ wl_i + bl
# Grid = (K tiles over nodes,) -- a pure reduction.
# ---------------------------------------------------------------------------
def pool_head_kernel(pool_ref, t1_ref, t2_ref, t3_ref,
                     s1_ref, c1_ref, s2_ref, c2_ref, s3_ref, c3_ref,
                     wl1_ref, wl2_ref, wl3_ref, bl_ref,
                     out_ref, acc1, acc2, acc3):
    k = pl.program_id(0)

    @pl.when(k == 0)
    def _init():
        acc1[...] = jnp.zeros_like(acc1)
        acc2[...] = jnp.zeros_like(acc2)
        acc3[...] = jnp.zeros_like(acc3)

    p = pool_ref[...]
    acc1[...] += jnp.dot(p, t1_ref[...], preferred_element_type=jnp.float32)
    acc2[...] += jnp.dot(p, t2_ref[...], preferred_element_type=jnp.float32)
    acc3[...] += jnp.dot(p, t3_ref[...], preferred_element_type=jnp.float32)

    @pl.when(k == pl.num_programs(0) - 1)
    def _finalize():
        # Mean pooling commutes with the per-feature BN affine (rows of P sum
        # to 1), so each layer's BN is applied here on the pooled features.
        p1 = acc1[...] * s1_ref[...] + c1_ref[...]
        p2 = acc2[...] * s2_ref[...] + c2_ref[...]
        p3 = acc3[...] * s3_ref[...] + c3_ref[...]
        out_ref[...] = (
            jnp.dot(p1, wl1_ref[...], preferred_element_type=jnp.float32)
            + jnp.dot(p2, wl2_ref[...], preferred_element_type=jnp.float32)
            + jnp.dot(p3, wl3_ref[...], preferred_element_type=jnp.float32)
            + bl_ref[...])


# ---------------------------------------------------------------------------
# Per-layer wrapper: tiled pallas_call + tiny cross-tile BN reduction in glue.
# ---------------------------------------------------------------------------
def _gin_layer(adj_bf16, h, scale, shift, wa, ba, wb, bb, gamma, beta,
               n_valid, tile):
    n_pad, feat = h.shape
    gi = n_pad // tile
    gk = n_pad // tile
    full = lambda i, k: (0, 0)

    flops = (2 * n_pad * n_pad * feat + 2 * 2 * n_pad * feat * feat)
    bytes_accessed = (n_pad * n_pad * 2          # bf16 adjacency
                      + gi * n_pad * feat * 4    # h re-read per row tile
                      + n_pad * feat * 4)        # t written back

    kernel = functools.partial(gin_layer_kernel, n_valid=n_valid, tile_n=tile)
    t, sums, sqs = pl.pallas_call(
        kernel,
        grid=(gi, gk),
        in_specs=[
            pl.BlockSpec((tile, tile), lambda i, k: (i, k)),     # A'
            pl.BlockSpec((tile, feat), lambda i, k: (k, 0)),     # h (pre-BN)
            pl.BlockSpec((1, feat), full),                       # BN scale
            pl.BlockSpec((1, feat), full),                       # BN shift
            pl.BlockSpec((feat, feat), full),                    # Wa (bf16)
            pl.BlockSpec((1, feat), full),                       # ba
            pl.BlockSpec((feat, feat), full),                    # Wb (bf16)
            pl.BlockSpec((1, feat), full),                       # bb
        ],
        out_specs=[
            pl.BlockSpec((tile, feat), lambda i, k: (i, 0)),      # t
            pl.BlockSpec((1, 1, feat), lambda i, k: (i, 0, 0)),   # partial sum
            pl.BlockSpec((1, 1, feat), lambda i, k: (i, 0, 0)),   # partial sq
        ],
        out_shape=[
            jax.ShapeDtypeStruct((n_pad, feat), jnp.float32),
            jax.ShapeDtypeStruct((gi, 1, feat), jnp.float32),
            jax.ShapeDtypeStruct((gi, 1, feat), jnp.float32),
        ],
        scratch_shapes=[pltpu.VMEM((tile, feat), jnp.float32)],
        compiler_params=pltpu.CompilerParams(
            dimension_semantics=("parallel", "arbitrary"),
            vmem_limit_bytes=_VMEM_LIMIT),
        cost_estimate=pl.CostEstimate(flops=int(flops), transcendentals=0,
                                      bytes_accessed=int(bytes_accessed)),
    )(adj_bf16, h, scale, shift, wa, ba, wb, bb)

    # Global (training-mode) BatchNorm statistics from the per-tile partials.
    total = jnp.sum(sums, axis=(0, 1))[None, :]                  # (1, feat)
    totsq = jnp.sum(sqs, axis=(0, 1))[None, :]
    mean = total / n_valid
    var = jnp.maximum(totsq / n_valid - mean * mean, 0.0)        # biased var
    new_scale = gamma * jax.lax.rsqrt(var + BN_EPS)              # 0 on padding
    new_shift = beta - mean * new_scale
    return t, new_scale, new_shift


def _pool_head(pool, t1, t2, t3, s1, c1, s2, c2, s3, c3, wl1, wl2, wl3, bl,
               tile):
    g_pad, n_pad = pool.shape
    feat = t1.shape[1]
    gk = n_pad // tile
    full = lambda k: (0, 0)

    flops = 3 * (2 * g_pad * n_pad * feat) + 3 * (2 * g_pad * feat * feat)
    bytes_accessed = 3 * n_pad * feat * 4 + g_pad * n_pad * 4

    return pl.pallas_call(
        pool_head_kernel,
        grid=(gk,),
        in_specs=[
            pl.BlockSpec((g_pad, tile), lambda k: (0, k)),       # pool matrix
            pl.BlockSpec((tile, feat), lambda k: (k, 0)),        # t1
            pl.BlockSpec((tile, feat), lambda k: (k, 0)),        # t2
            pl.BlockSpec((tile, feat), lambda k: (k, 0)),        # t3
            pl.BlockSpec((1, feat), full),                       # scale1
            pl.BlockSpec((1, feat), full),                       # shift1
            pl.BlockSpec((1, feat), full),                       # scale2
            pl.BlockSpec((1, feat), full),                       # shift2
            pl.BlockSpec((1, feat), full),                       # scale3
            pl.BlockSpec((1, feat), full),                       # shift3
            pl.BlockSpec((feat, feat), full),                    # wl1
            pl.BlockSpec((feat, feat), full),                    # wl2
            pl.BlockSpec((feat, feat), full),                    # wl3
            pl.BlockSpec((1, feat), full),                       # bl
        ],
        out_specs=pl.BlockSpec((g_pad, feat), lambda k: (0, 0)),
        out_shape=jax.ShapeDtypeStruct((g_pad, feat), jnp.float32),
        scratch_shapes=[
            pltpu.VMEM((g_pad, feat), jnp.float32),
            pltpu.VMEM((g_pad, feat), jnp.float32),
            pltpu.VMEM((g_pad, feat), jnp.float32),
        ],
        compiler_params=pltpu.CompilerParams(
            dimension_semantics=("arbitrary",),
            vmem_limit_bytes=_VMEM_LIMIT),
        cost_estimate=pl.CostEstimate(flops=int(flops), transcendentals=0,
                                      bytes_accessed=int(bytes_accessed)),
    )(pool, t1, t2, t3, s1, c1, s2, c2, s3, c3, wl1, wl2, wl3, bl)


# ---------------------------------------------------------------------------
# Full forward (JAX glue builds the dense adjacency / pooling operators and
# zero-pads every feature dimension to the 128-lane width).
# ---------------------------------------------------------------------------
def gin_hidden_forward(x, edge_index, batch, params, num_graphs, *, tile=128):
    assert tile % LANE == 0, "tile must be a multiple of 128 (lane width)"
    n, in_dim = x.shape
    hidden = params[-1].shape[-1]
    feat = ((max(in_dim, hidden) + LANE - 1) // LANE) * LANE   # lane-dense
    n_pad = ((n + tile - 1) // tile) * tile
    g_pad = ((num_graphs + 7) // 8) * 8                        # sublane-dense
    src, dst = edge_index[0], edge_index[1]

    # Dense adjacency with the GIN self term (eps=0 -> +1) folded into the
    # diagonal: A'[i, j] = #edges j->i, A'[i, i] += 1.  Counts are exact in
    # bf16; padded rows/columns stay zero, so padded nodes never leak.
    adj = jnp.zeros((n_pad, n_pad), jnp.float32).at[dst, src].add(1.0)
    adj = adj.at[jnp.arange(n), jnp.arange(n)].add(1.0)
    adj = adj.astype(jnp.bfloat16)
    # TODO(synk): for genuinely sparse graphs replace the dense A'@h with a
    # scalar-prefetch gather / segment-sum aggregation (O(E*H) vs O(N^2*H)).

    x_pad = jnp.zeros((n_pad, feat), jnp.float32).at[:n, :in_dim].set(x)

    # Mean-pooling matrix P[g, i] = 1/|g| if batch[i] == g (padded rows/cols 0).
    onehot = (batch[None, :] == jnp.arange(num_graphs)[:, None]).astype(jnp.float32)
    counts = jnp.maximum(jnp.sum(onehot, axis=1, keepdims=True), 1.0)
    pool = jnp.zeros((g_pad, n_pad), jnp.float32).at[:num_graphs, :n].set(onehot / counts)

    def pad2(a, rows, cols):
        out = jnp.zeros((rows, cols), a.dtype)
        return out.at[:a.shape[0], :a.shape[1]].set(a)

    # Identity affine for the (un-normalised) raw input features.
    scale = jnp.ones((1, feat), jnp.float32)
    shift = jnp.zeros((1, feat), jnp.float32)

    h = x_pad
    layer_outs = []
    for li in range(3):
        wa, ba, wb, bb, gamma, beta = params[6 * li:6 * li + 6]
        h, scale, shift = _gin_layer(
            adj, h, scale, shift,
            pad2(wa, feat, feat).astype(jnp.bfloat16), pad2(ba, 1, feat),
            pad2(wb, feat, feat).astype(jnp.bfloat16), pad2(bb, 1, feat),
            pad2(gamma, 1, feat),     # padded gamma = 0 -> padded scale = 0
            pad2(beta, 1, feat),      # padded beta  = 0 -> padded shift = 0
            n, tile)
        layer_outs.append((h, scale, shift))

    (t1, s1, c1), (t2, s2, c2), (t3, s3, c3) = layer_outs
    wl, bl = params[18], params[19]
    wl1 = pad2(wl[:hidden], feat, feat)
    wl2 = pad2(wl[hidden:2 * hidden], feat, feat)
    wl3 = pad2(wl[2 * hidden:], feat, feat)
    bl_p = pad2(bl, 1, feat)

    out_full = _pool_head(pool, t1, t2, t3, s1, c1, s2, c2, s3, c3,
                          wl1, wl2, wl3, bl_p, tile)
    return out_full[:num_graphs, :hidden]


def init_params(key, input_dim, hidden_dim):
    """Deterministic synthetic parameters (shapes match the PyTorch module)."""
    dims = [(input_dim, hidden_dim), (hidden_dim, hidden_dim),
            (hidden_dim, hidden_dim)]
    params = []
    for din, dh in dims:
        key, *ks = jax.random.split(key, 7)
        wa = 0.1 * jax.random.normal(ks[0], (din, dh), jnp.float32)
        ba = 0.1 * jax.random.normal(ks[1], (1, dh), jnp.float32)
        wb = 0.1 * jax.random.normal(ks[2], (dh, dh), jnp.float32)
        bb = 0.1 * jax.random.normal(ks[3], (1, dh), jnp.float32)
        gamma = 1.0 + 0.1 * jax.random.normal(ks[4], (1, dh), jnp.float32)
        beta = 0.1 * jax.random.normal(ks[5], (1, dh), jnp.float32)
        params += [wa, ba, wb, bb, gamma, beta]
    key, k1, k2 = jax.random.split(key, 3)
    wl = 0.1 * jax.random.normal(k1, (3 * hidden_dim, hidden_dim), jnp.float32)
    bl = 0.1 * jax.random.normal(k2, (1, hidden_dim), jnp.float32)
    params += [wl, bl]
    return params


def gin_hidden_reference(x, edge_index, batch, params, num_graphs):
    """Pure-JAX f32 reference (scatter-add aggregation)."""
    src, dst = edge_index[0], edge_index[1]

    def layer(h, wa, ba, wb, bb, gamma, beta):
        agg = h + jnp.zeros_like(h).at[dst].add(h[src])
        t = jnp.maximum(agg @ wa + ba, 0.0)
        t = t @ wb + bb
        t = jnp.maximum(t, 0.0)
        mean = t.mean(axis=0, keepdims=True)
        var = ((t - mean) ** 2).mean(axis=0, keepdims=True)
        return (t - mean) * jax.lax.rsqrt(var + BN_EPS) * gamma + beta

    x1 = layer(x, *params[0:6])
    x2 = layer(x1, *params[6:12])
    x3 = layer(x2, *params[12:18])
    x4 = jnp.concatenate([x1, x2, x3], axis=-1)
    onehot = (batch[None, :] == jnp.arange(num_graphs)[:, None]).astype(jnp.float32)
    pooled = (onehot @ x4) / jnp.maximum(onehot.sum(axis=1, keepdims=True), 1.0)
    return pooled @ params[18] + params[19]


if __name__ == "__main__":
    key = jax.random.PRNGKey(0)

    nodes_per_graph = 50
    num_graphs = 4
    num_nodes = nodes_per_graph * num_graphs      # 200 nodes -> padded to 256
    input_dim = 16
    hidden_dim = 32
    tile = 128                                    # -> grid (2, 2): multi-tile

    key, kx = jax.random.split(key)
    x = jax.random.normal(kx, (num_nodes, input_dim), jnp.float32)

    # Four ring graphs (bidirectional edges).
    src_list, dst_list = [], []
    for g in range(num_graphs):
        base = g * nodes_per_graph
        for i in range(nodes_per_graph):
            a = base + i
            b = base + (i + 1) % nodes_per_graph
            src_list += [a, b]
            dst_list += [b, a]
    edge_index = jnp.array([src_list, dst_list], dtype=jnp.int32)
    batch = jnp.array([g for g in range(num_graphs)
                       for _ in range(nodes_per_graph)], dtype=jnp.int32)

    params = init_params(key, input_dim, hidden_dim)

    out = gin_hidden_forward(x, edge_index, batch, params, num_graphs,
                             tile=tile)
    out = jax.block_until_ready(out)

    ref = gin_hidden_reference(x, edge_index, batch, params, num_graphs)
    assert out.shape == (num_graphs, hidden_dim)
    # bf16 MXU operands (per perf guidance) vs an all-f32 reference: allow a
    # few percent of mixed-precision slack.
    max_err = float(jnp.max(jnp.abs(out - ref)))
    assert jnp.allclose(out, ref, atol=5e-2, rtol=5e-2), (
        f"kernel mismatch vs reference, max abs err {max_err}")

    print("KERNEL_OK")
</pallas_src>

<mosaic_0001>
module attributes {stable_mosaic.version = 11 : i64} {
  func.func @gin_layer_kernel(%arg0: i32, %arg1: i32, %arg2: memref<128x128xbf16, #tpu.memory_space<vmem>>, %arg3: memref<128x128xf32, #tpu.memory_space<vmem>>, %arg4: memref<1x128xf32, #tpu.memory_space<vmem>>, %arg5: memref<1x128xf32, #tpu.memory_space<vmem>>, %arg6: memref<128x128xbf16, #tpu.memory_space<vmem>>, %arg7: memref<1x128xf32, #tpu.memory_space<vmem>>, %arg8: memref<128x128xbf16, #tpu.memory_space<vmem>>, %arg9: memref<1x128xf32, #tpu.memory_space<vmem>>, %arg10: memref<128x128xf32, #tpu.memory_space<vmem>>, %arg11: memref<1x1x128xf32, #tpu.memory_space<vmem>>, %arg12: memref<1x1x128xf32, #tpu.memory_space<vmem>>, %arg13: memref<128x128xf32, #tpu.memory_space<vmem>>) attributes {dimension_semantics = [#tpu.dimension_semantics<parallel>, #tpu.dimension_semantics<arbitrary>], iteration_bounds = array<i64: 2, 2>, scalar_prefetch = 0 : i64, scratch_operands = 1 : i64, tpu.core_type = #tpu.core_type<tc>, window_params = [{transform_indices = @transform_0, window_bounds = array<i64: 128, 128>}, {transform_indices = @transform_1, window_bounds = array<i64: 128, 128>}, {pipeline_mode = #tpu.pipeline_mode<synchronous>, transform_indices = @transform_2, window_bounds = array<i64: 1, 128>}, {pipeline_mode = #tpu.pipeline_mode<synchronous>, transform_indices = @transform_3, window_bounds = array<i64: 1, 128>}, {pipeline_mode = #tpu.pipeline_mode<synchronous>, transform_indices = @transform_4, window_bounds = array<i64: 128, 128>}, {pipeline_mode = #tpu.pipeline_mode<synchronous>, transform_indices = @transform_5, window_bounds = array<i64: 1, 128>}, {pipeline_mode = #tpu.pipeline_mode<synchronous>, transform_indices = @transform_6, window_bounds = array<i64: 128, 128>}, {pipeline_mode = #tpu.pipeline_mode<synchronous>, transform_indices = @transform_7, window_bounds = array<i64: 1, 128>}, {transform_indices = @transform_8, window_bounds = array<i64: 128, 128>}, {transform_indices = @transform_9, window_bounds = array<i64: 1, 1, 128>}, {transform_indices = @transform_10, window_bounds = array<i64: 1, 1, 128>}]} {
    %c0_i32 = arith.constant 0 : i32
    %0 = arith.cmpi eq, %arg1, %c0_i32 : i32
    %1 = arith.extui %0 : i1 to i32
    %c0_i32_0 = arith.constant 0 : i32
    %2 = arith.cmpi ne, %1, %c0_i32_0 : i32
    scf.if %2 {
      %cst_13 = arith.constant 0.000000e+00 : f32
      %19 = vector.broadcast %cst_13 : f32 to vector<128x128xf32>
      %c0_14 = arith.constant 0 : index
      %c0_15 = arith.constant 0 : index
      %20 = vector.load %arg13[%c0_14, %c0_15] : memref<128x128xf32, #tpu.memory_space<vmem>>, vector<128x128xf32>
      tpu.vector_store %arg13[%c0_14, %c0_15], %19 {strides = array<i32>} : memref<128x128xf32, #tpu.memory_space<vmem>>, vector<128x128xf32>,
    } else {
    }
    %c0 = arith.constant 0 : index
    %c0_1 = arith.constant 0 : index
    %3 = vector.load %arg3[%c0, %c0_1] : memref<128x128xf32, #tpu.memory_space<vmem>>, vector<128x128xf32>
    %c0_2 = arith.constant 0 : index
    %c0_3 = arith.constant 0 : index
    %4 = vector.load %arg4[%c0_2, %c0_3] : memref<1x128xf32, #tpu.memory_space<vmem>>, vector<1x128xf32>
    %5 = vector.broadcast %4 : vector<1x128xf32> to vector<128x128xf32>
    %6 = arith.mulf %3, %5 : vector<128x128xf32>
    %c0_4 = arith.constant 0 : index
    %c0_5 = arith.constant 0 : index
    %7 = vector.load %arg5[%c0_4, %c0_5] : memref<1x128xf32, #tpu.memory_space<vmem>>, vector<1x128xf32>
    %8 = vector.broadcast %7 : vector<1x128xf32> to vector<128x128xf32>
    %9 = arith.addf %6, %8 : vector<128x128xf32>
    %c0_6 = arith.constant 0 : index
    %c0_7 = arith.constant 0 : index
    %10 = vector.load %arg13[%c0_6, %c0_7] : memref<128x128xf32, #tpu.memory_space<vmem>>, vector<128x128xf32>
    %c0_8 = arith.constant 0 : index
    %c0_9 = arith.constant 0 : index
    %11 = vector.load %arg2[%c0_8, %c0_9] : memref<128x128xbf16, #tpu.memory_space<vmem>>, vector<128x128xbf16>
    %12 = arith.truncf %9 : vector<128x128xf32> to vector<128x128xbf16>
    %cst = arith.constant dense<0.000000e+00> : vector<128x128xf32>
    %13 = tpu.matmul %11, %12, %cst {dimension_numbers = #tpu.dot_dimension_numbers<[1], [0], [0], [1], [0, 0, 1, 1], [], []>} : vector<128x128xbf16>, vector<128x128xbf16>, vector<128x128xf32> -> vector<128x128xf32>
    %14 = arith.addf %10, %13 : vector<128x128xf32>
    %c0_10 = arith.constant 0 : index
    %c0_11 = arith.constant 0 : index
    %15 = vector.load %arg13[%c0_10, %c0_11] : memref<128x128xf32, #tpu.memory_space<vmem>>, vector<128x128xf32>
    tpu.vector_store %arg13[%c0_10, %c0_11], %14 {strides = array<i32>} : memref<128x128xf32, #tpu.memory_space<vmem>>, vector<128x128xf32>,
    %c1_i32 = arith.constant 1 : i32
    %16 = arith.cmpi eq, %arg1, %c1_i32 : i32
    %17 = arith.extui %16 : i1 to i32
    %c0_i32_12 = arith.constant 0 : i32
    %18 = arith.cmpi ne, %17, %c0_i32_12 : i32
    scf.if %18 {
      %c0_13 = arith.constant 0 : index
      %c0_14 = arith.constant 0 : index
      %19 = vector.load %arg13[%c0_13, %c0_14] : memref<128x128xf32, #tpu.memory_space<vmem>>, vector<128x128xf32>
      %20 = arith.truncf %19 : vector<128x128xf32> to vector<128x128xbf16>
      %c0_15 = arith.constant 0 : index
      %c0_16 = arith.constant 0 : index
      %21 = vector.load %arg6[%c0_15, %c0_16] : memref<128x128xbf16, #tpu.memory_space<vmem>>, vector<128x128xbf16>
      %cst_17 = arith.constant dense<0.000000e+00> : vector<128x128xf32>
      %22 = tpu.matmul %20, %21, %cst_17 {dimension_numbers = #tpu.dot_dimension_numbers<[1], [0], [0], [1], [0, 0, 1, 1], [], []>} : vector<128x128xbf16>, vector<128x128xbf16>, vector<128x128xf32> -> vector<128x128xf32>
      %c0_18 = arith.constant 0 : index
      %c0_19 = arith.constant 0 : index
      %23 = vector.load %arg7[%c0_18, %c0_19] : memref<1x128xf32, #tpu.memory_space<vmem>>, vector<1x128xf32>
      %24 = vector.broadcast %23 : vector<1x128xf32> to vector<128x128xf32>
      %25 = arith.addf %22, %24 : vector<128x128xf32>
      %cst_20 = arith.constant 0.000000e+00 : f32
      %26 = vector.broadcast %cst_20 : f32 to vector<128x128xf32>
      %27 = arith.maximumf %25, %26 : vector<128x128xf32>
      %28 = arith.truncf %27 : vector<128x128xf32> to vector<128x128xbf16>
      %c0_21 = arith.constant 0 : index
      %c0_22 = arith.constant 0 : index
      %29 = vector.load %arg8[%c0_21, %c0_22] : memref<128x128xbf16, #tpu.memory_space<vmem>>, vector<128x128xbf16>
      %cst_23 = arith.constant dense<0.000000e+00> : vector<128x128xf32>
      %30 = tpu.matmul %28, %29, %cst_23 {dimension_numbers = #tpu.dot_dimension_numbers<[1], [0], [0], [1], [0, 0, 1, 1], [], []>} : vector<128x128xbf16>, vector<128x128xbf16>, vector<128x128xf32> -> vector<128x128xf32>
      %c0_24 = arith.constant 0 : index
      %c0_25 = arith.constant 0 : index
      %31 = vector.load %arg9[%c0_24, %c0_25] : memref<1x128xf32, #tpu.memory_space<vmem>>, vector<1x128xf32>
      %32 = vector.broadcast %31 : vector<1x128xf32> to vector<128x128xf32>
      %33 = arith.addf %30, %32 : vector<128x128xf32>
      %cst_26 = arith.constant 0.000000e+00 : f32
      %34 = vector.broadcast %cst_26 : f32 to vector<128x128xf32>
      %35 = arith.maximumf %33, %34 : vector<128x128xf32>
      %c0_27 = arith.constant 0 : index
      %c0_28 = arith.constant 0 : index
      %36 = vector.load %arg10[%c0_27, %c0_28] : memref<128x128xf32, #tpu.memory_space<vmem>>, vector<128x128xf32>
      tpu.vector_store %arg10[%c0_27, %c0_28], %35 {strides = array<i32>} : memref<128x128xf32, #tpu.memory_space<vmem>>, vector<128x128xf32>,
      %37 = tpu.iota {dimensions = array<i32: 0>} : vector<128x128xi32>
      %c128_i32 = arith.constant 128 : i32
      %38 = arith.muli %arg0, %c128_i32 : i32
      %39 = vector.broadcast %38 : i32 to vector<128x128xi32>
      %40 = arith.addi %37, %39 : vector<128x128xi32>
      %c200_i32 = arith.constant 200 : i32
      %41 = vector.broadcast %c200_i32 : i32 to vector<128x128xi32>
      %42 = arith.cmpi slt, %40, %41 : vector<128x128xi32>
      %cst_29 = arith.constant 0.000000e+00 : f32
      %43 = vector.broadcast %cst_29 : f32 to vector<128x128xf32>
      %44 = arith.select %42, %35, %43 : vector<128x128xi1>, vector<128x128xf32>
      %cst_30 = arith.constant dense<0.000000e+00> : vector<128xf32>
      %45 = vector.multi_reduction <add>, %44, %cst_30 [0] : vector<128x128xf32> to vector<128xf32>
      %46 = vector.shape_cast %45 : vector<128xf32> to vector<1x128xf32>
      %47 = vector.shape_cast %46 : vector<1x128xf32> to vector<1x1x128xf32>
      %c0_31 = arith.constant 0 : index
      %c0_32 = arith.constant 0 : index
      %c0_33 = arith.constant 0 : index
      %48 = vector.load %arg11[%c0_31, %c0_32, %c0_33] : memref<1x1x128xf32, #tpu.memory_space<vmem>>, vector<1x1x128xf32>
      tpu.vector_store %arg11[%c0_31, %c0_32, %c0_33], %47 {strides = array<i32>} : memref<1x1x128xf32, #tpu.memory_space<vmem>>, vector<1x1x128xf32>,
      %49 = arith.mulf %44, %44 : vector<128x128xf32>
      %cst_34 = arith.constant dense<0.000000e+00> : vector<128xf32>
      %50 = vector.multi_reduction <add>, %49, %cst_34 [0] : vector<128x128xf32> to vector<128xf32>
      %51 = vector.shape_cast %50 : vector<128xf32> to vector<1x128xf32>
      %52 = vector.shape_cast %51 : vector<1x128xf32> to vector<1x1x128xf32>
      %c0_35 = arith.constant 0 : index
      %c0_36 = arith.constant 0 : index
      %c0_37 = arith.constant 0 : index
      %53 = vector.load %arg12[%c0_35, %c0_36, %c0_37] : memref<1x1x128xf32, #tpu.memory_space<vmem>>, vector<1x1x128xf32>
      tpu.vector_store %arg12[%c0_35, %c0_36, %c0_37], %52 {strides = array<i32>} : memref<1x1x128xf32, #tpu.memory_space<vmem>>, vector<1x1x128xf32>,
    } else {
    }
    return
  }
  func.func @transform_0(%arg0: i32, %arg1: i32) -> (i32, i32) {
    %c0_i32 = arith.constant 0 : i32
    return %arg0, %arg1 : i32, i32
  }
  func.func @transform_1(%arg0: i32, %arg1: i32) -> (i32, i32) {
    %c0_i32 = arith.constant 0 : i32
    %c0_i32_0 = arith.constant 0 : i32
    return %arg1, %c0_i32 : i32, i32
  }
  func.func @transform_2(%arg0: i32, %arg1: i32) -> (i32, i32) {
    %c0_i32 = arith.constant 0 : i32
    %c0_i32_0 = arith.constant 0 : i32
    %c0_i32_1 = arith.constant 0 : i32
    return %c0_i32, %c0_i32_0 : i32, i32
  }
  func.func @transform_3(%arg0: i32, %arg1: i32) -> (i32, i32) {
    %c0_i32 = arith.constant 0 : i32
    %c0_i32_0 = arith.constant 0 : i32
    %c0_i32_1 = arith.constant 0 : i32
    return %c0_i32, %c0_i32_0 : i32, i32
  }
  func.func @transform_4(%arg0: i32, %arg1: i32) -> (i32, i32) {
    %c0_i32 = arith.constant 0 : i32
    %c0_i32_0 = arith.constant 0 : i32
    %c0_i32_1 = arith.constant 0 : i32
    return %c0_i32, %c0_i32_0 : i32, i32
  }
  func.func @transform_5(%arg0: i32, %arg1: i32) -> (i32, i32) {
    %c0_i32 = arith.constant 0 : i32
    %c0_i32_0 = arith.constant 0 : i32
    %c0_i32_1 = arith.constant 0 : i32
    return %c0_i32, %c0_i32_0 : i32, i32
  }
  func.func @transform_6(%arg0: i32, %arg1: i32) -> (i32, i32) {
    %c0_i32 = arith.constant 0 : i32
    %c0_i32_0 = arith.constant 0 : i32
    %c0_i32_1 = arith.constant 0 : i32
    return %c0_i32, %c0_i32_0 : i32, i32
  }
  func.func @transform_7(%arg0: i32, %arg1: i32) -> (i32, i32) {
    %c0_i32 = arith.constant 0 : i32
    %c0_i32_0 = arith.constant 0 : i32
    %c0_i32_1 = arith.constant 0 : i32
    return %c0_i32, %c0_i32_0 : i32, i32
  }
  func.func @transform_8(%arg0: i32, %arg1: i32) -> (i32, i32) {
    %c0_i32 = arith.constant 0 : i32
    %c0_i32_0 = arith.constant 0 : i32
    return %arg0, %c0_i32 : i32, i32
  }
  func.func @transform_9(%arg0: i32, %arg1: i32) -> (i32, i32, i32) {
    %c0_i32 = arith.constant 0 : i32
    %c0_i32_0 = arith.constant 0 : i32
    %c0_i32_1 = arith.constant 0 : i32
    return %arg0, %c0_i32, %c0_i32_0 : i32, i32, i32
  }
  func.func @transform_10(%arg0: i32, %arg1: i32) -> (i32, i32, i32) {
    %c0_i32 = arith.constant 0 : i32
    %c0_i32_0 = arith.constant 0 : i32
    %c0_i32_1 = arith.constant 0 : i32
    return %arg0, %c0_i32, %c0_i32_0 : i32, i32, i32
  }
}

</mosaic_0001>

<llo_original>
// kernel: tpu_custom_call.1
$region0: #{tpu_custom_call.1}
  #allocation0 [shape = 'u32[]', space=smem, size = 0x4, offset = 0x4, fixed_abs, tag = 'smem constant byte address 0x4 - core index']
  #allocation1 [shape = 'u32[72,128]{1,0:T(1,128)}', space=vmem, size = 0x9000, scoped, tag = 'internal scratch']
  #allocation2 [shape = 'f32[128,128]{1,0:T(8,128)}', space=vmem, size = 0x10000, scoped, tag = 'scratch operand']
  %s0 = inlined_call_operand.hbm [shape: bf16[256,256], index: 0, kind: input, shape index: {}]
  %s1 = inlined_call_operand.hbm [shape: f32[256,128], index: 1, kind: input, shape index: {}]
  %s2 = inlined_call_operand.vmem [shape: f32[1,128], index: 2, kind: input, shape index: {}]
  %s3 = inlined_call_operand.vmem [shape: f32[1,128], index: 3, kind: input, shape index: {}]
  %s4 = inlined_call_operand.hbm [shape: bf16[128,128], index: 4, kind: input, shape index: {}]
  %s5 = inlined_call_operand.vmem [shape: f32[1,128], index: 5, kind: input, shape index: {}]
  %s6 = inlined_call_operand.hbm [shape: bf16[128,128], index: 6, kind: input, shape index: {}]
  %s7 = inlined_call_operand.vmem [shape: f32[1,128], index: 7, kind: input, shape index: {}]
  %s8 = inlined_call_operand.hbm [shape: f32[256,128], index: 8, kind: output, shape index: {0}]
  %s9 = inlined_call_operand.hbm [shape: f32[2,1,128], index: 9, kind: output, shape index: {1}]
  %s10 = inlined_call_operand.hbm [shape: f32[2,1,128], index: 10, kind: output, shape index: {2}]
  %11 = xla_tuple %s8, %s9, %s10
  %s12 = sld [smem:[#allocation0]]
  $region105: #{tpu_custom_call.1} parent=0
    _
  %s14 = ssub.s32 1, %s12
  %s15 = scalar_select 0, %s14, %s12
  $region1: #{tpu_custom_call.1} parent=0
    #allocation3 [shape = 'u8[65536]{0}', space=vmem, size = 0x10000, scoped, tag = 'input window, operand 0']
    #allocation4 [shape = 's32[2]{0}', space=sflag, size = 0x8, scoped, tag = 'scoped memory for tpu_custom_call.1']
    #allocation5 [shape = 's32[2]{0}', space=sflag, size = 0x8, scoped, tag = 'scoped memory for tpu_custom_call.1']
    #allocation6 [shape = 'u8[131072]{0}', space=vmem, size = 0x20000, scoped, tag = 'input window, operand 1']
    #allocation7 [shape = 's32[2]{0}', space=sflag, size = 0x8, scoped, tag = 'scoped memory for tpu_custom_call.1']
    #allocation8 [shape = 'u8[32768]{0}', space=vmem, size = 0x8000, scoped, tag = 'input window, operand 4, single buffered']
    #allocation9 [shape = 'u8[32768]{0}', space=vmem, size = 0x8000, scoped, tag = 'input window, operand 6, single buffered']
    #allocation10 [shape = 's32[1]{0}', space=sflag, size = 0x4, scoped, tag = 'scoped memory for tpu_custom_call.1']
    #allocation11 [shape = 'u8[131072]{0}', space=vmem, size = 0x20000, scoped, tag = 'output window, operand 0']
    #allocation12 [shape = 'u8[1024]{0}', space=vmem, size = 0x400, scoped, tag = 'output window, operand 1']
    #allocation13 [shape = 's32[2]{0}', space=sflag, size = 0x8, scoped, tag = 'scoped memory for tpu_custom_call.1']
    #allocation14 [shape = 'u8[1024]{0}', space=vmem, size = 0x400, scoped, tag = 'output window, operand 2']
    %16 = vsyncpa [#allocation4], 0
    %s17 = scalar_lea.sflag [#allocation4], 1
    %18 = vsyncpa %s17, 0
    %19 = vsyncpa [#allocation7], 0
    %s20 = scalar_lea.sflag [#allocation7], 1
    %21 = vsyncpa %s20, 0
    %22 = vsyncpa [#allocation10], 0
    %23 = vsyncpa [#allocation5], 0
    %s24 = scalar_lea.sflag [#allocation5], 1
    %25 = vsyncpa %s24, 0
    %26 = vsyncpa [#allocation13], 0
    %s27 = scalar_lea.sflag [#allocation13], 1
    %28 = vsyncpa %s27, 0
    loop: start=0, step=1, limit=6
    $region2: #{tpu_custom_call.1} parent=1 // loop_pre_header
      _
    $region3: #{tpu_custom_call.1} parent=1 // loop_header
      %s30 = sphi 0, %s34
      %p31 = scmp.ge.s32.totalorder %s30, 6
      %s37 = sphi 0, %s49
      %s38 = sphi 0, %s45
      %s39 = sphi 0, %s37
      %s40 = sphi 0, %s38
      %s41 = sphi 0, %s39
      %s42 = sphi 0, %s40
      %s54 = sphi 0, %s56
      %s57 = sphi 0, %s54
      %s58 = sphi 0, %s57
      %s74 = sphi 0, %s58
      %s80 = sphi 0, %s82
      %s83 = sphi 0, %s80
      %s84 = sphi 0, %s83
      %s100 = sphi 0, %s84
      %s104 = sphi 0, %s104
      %s106 = sphi 0, %s104
      %s107 = sphi 0, %s106
      %s121 = sphi 0, %s107
      %s125 = sphi 0, %s125
      %s127 = sphi 0, %s125
      %s128 = sphi 0, %s127
      %s142 = sphi 0, %s128
      %s146 = sphi 0, %s146
      %s148 = sphi 0, %s146
      %s149 = sphi 0, %s148
      %s163 = sphi 0, %s149
      %s167 = sphi 0, %s167
      %s169 = sphi 0, %s167
      %s170 = sphi 0, %s169
      %s184 = sphi 0, %s170
      %s188 = sphi 0, %s188
      %s190 = sphi 0, %s188
      %s191 = sphi 0, %s190
      %s205 = sphi 0, %s191
      %s209 = sphi 0, %s209
      %s211 = sphi 0, %s209
      %s212 = sphi 0, %s211
      %s226 = sphi 0, %s212
      %s232 = sphi 0, %s234
      %s235 = sphi 0, %s232
      %s236 = sphi 0, %s235
      %s252 = sphi 0, %s236
      %s258 = sphi 0, %s260
      %s261 = sphi 0, %s258
      %s262 = sphi 0, %s261
      %s278 = sphi 0, %s262
      %s284 = sphi 0, %s286
      %s287 = sphi 0, %s284
      %s288 = sphi 0, %s287
      %s304 = sphi 0, %s288
    $region4: #{tpu_custom_call.1} parent=1 // loop_header_branch
      %33 = sbr.rel (%p31) target = $region8
    $region5: #{tpu_custom_call.1} parent=1 // loop_body
      %s35 = ssub.s32 %s30, 1
      %s36 = ssub.s32 %s30, 2
      %s43 = sadd.s32 1, %s38
      %p44 = scmp.ge.s32.totalorder %s43, 2
      %s45 = scalar_select %p44, 0, %s43
      %s46 = sadd.s32 1, %s37
      %s47 = scalar_select %p44, %s46, %s37
      %p48 = scmp.ge.s32.totalorder %s47, 2
      %s49 = scalar_select %p48, 0, %s47
      %s50 = ssub.s32 %s37, %s49
      %s51 = ssub.s32 %s38, %s45
      %s52 = sor.u32 %s50, %s51
      %p53 = scmp.eq.s32.totalorder %s52, 0
      %s55 = sadd.s32 %s54, 1
      %s56 = scalar_select %p53, %s54, %s55
      %p59 = pneg %p53
      %p60 = scmp.eq.s32.totalorder %s30, 3
      %p61 = por %p59, %p60
      %p62 = scmp.ne.s32.totalorder %s54, %s57
      %p63 = scmp.eq.s32.totalorder %s30, 0
      %p64 = por %p62, %p63
      %p65 = scmp.ne.s32.totalorder %s54, %s57
      %p66 = scmp.eq.s32.totalorder %s35, 3
      %p67 = por %p65, %p66
      %p68 = scmp.ne.s32.totalorder %s57, %s58
      %p69 = scmp.eq.s32.totalorder %s35, 0
      %p70 = por %p68, %p69
      %p71 = scmp.ne.s32.totalorder %s57, %s58
      %p72 = scmp.eq.s32.totalorder %s36, 3
      %p73 = por %p71, %p72
      %p75 = scmp.ne.s32.totalorder %s58, %s74
      %p76 = scmp.eq.s32.totalorder %s36, 0
      %p77 = por %p75, %p76
      %s78 = ssub.s32 %s38, %s45
      %p79 = scmp.eq.s32.totalorder %s78, 0
      %s81 = sadd.s32 %s80, 1
      %s82 = scalar_select %p79, %s80, %s81
      %p85 = pneg %p79
      %p86 = scmp.eq.s32.totalorder %s30, 3
      %p87 = por %p85, %p86
      %p88 = scmp.ne.s32.totalorder %s80, %s83
      %p89 = scmp.eq.s32.totalorder %s30, 0
      %p90 = por %p88, %p89
      %p91 = scmp.ne.s32.totalorder %s80, %s83
      %p92 = scmp.eq.s32.totalorder %s35, 3
      %p93 = por %p91, %p92
      %p94 = scmp.ne.s32.totalorder %s83, %s84
      %p95 = scmp.eq.s32.totalorder %s35, 0
      %p96 = por %p94, %p95
      %p97 = scmp.ne.s32.totalorder %s83, %s84
      %p98 = scmp.eq.s32.totalorder %s36, 3
      %p99 = por %p97, %p98
      %p101 = scmp.ne.s32.totalorder %s84, %s100
      %p102 = scmp.eq.s32.totalorder %s36, 0
      %p103 = por %p101, %p102
      %s105 = sadd.s32 %s104, 1
      %p108 = scmp.eq.s32.totalorder %s30, 3
      %p109 = scmp.ne.s32.totalorder %s104, %s106
      %p110 = scmp.eq.s32.totalorder %s30, 0
      %p111 = por %p109, %p110
      %p112 = scmp.ne.s32.totalorder %s104, %s106
      %p113 = scmp.eq.s32.totalorder %s35, 3
      %p114 = por %p112, %p113
      %p115 = scmp.ne.s32.totalorder %s106, %s107
      %p116 = scmp.eq.s32.totalorder %s35, 0
      %p117 = por %p115, %p116
      %p118 = scmp.ne.s32.totalorder %s106, %s107
      %p119 = scmp.eq.s32.totalorder %s36, 3
      %p120 = por %p118, %p119
      %p122 = scmp.ne.s32.totalorder %s107, %s121
      %p123 = scmp.eq.s32.totalorder %s36, 0
      %p124 = por %p122, %p123
      %s126 = sadd.s32 %s125, 1
      %p129 = scmp.eq.s32.totalorder %s30, 3
      %p130 = scmp.ne.s32.totalorder %s125, %s127
      %p131 = scmp.eq.s32.totalorder %s30, 0
      %p132 = por %p130, %p131
      %p133 = scmp.ne.s32.totalorder %s125, %s127
      %p134 = scmp.eq.s32.totalorder %s35, 3
      %p135 = por %p133, %p134
      %p136 = scmp.ne.s32.totalorder %s127, %s128
      %p137 = scmp.eq.s32.totalorder %s35, 0
      %p138 = por %p136, %p137
      %p139 = scmp.ne.s32.totalorder %s127, %s128
      %p140 = scmp.eq.s32.totalorder %s36, 3
      %p141 = por %p139, %p140
      %p143 = scmp.ne.s32.totalorder %s128, %s142
      %p144 = scmp.eq.s32.totalorder %s36, 0
      %p145 = por %p143, %p144
      %s147 = sadd.s32 %s146, 1
      %p150 = scmp.eq.s32.totalorder %s30, 3
      %p151 = scmp.ne.s32.totalorder %s146, %s148
      %p152 = scmp.eq.s32.totalorder %s30, 0
      %p153 = por %p151, %p152
      %p154 = scmp.ne.s32.totalorder %s146, %s148
      %p155 = scmp.eq.s32.totalorder %s35, 3
      %p156 = por %p154, %p155
      %p157 = scmp.ne.s32.totalorder %s148, %s149
      %p158 = scmp.eq.s32.totalorder %s35, 0
      %p159 = por %p157, %p158
      %p160 = scmp.ne.s32.totalorder %s148, %s149
      %p161 = scmp.eq.s32.totalorder %s36, 3
      %p162 = por %p160, %p161
      %p164 = scmp.ne.s32.totalorder %s149, %s163
      %p165 = scmp.eq.s32.totalorder %s36, 0
      %p166 = por %p164, %p165
      %s168 = sadd.s32 %s167, 1
      %p171 = scmp.eq.s32.totalorder %s30, 3
      %p172 = scmp.ne.s32.totalorder %s167, %s169
      %p173 = scmp.eq.s32.totalorder %s30, 0
      %p174 = por %p172, %p173
      %p175 = scmp.ne.s32.totalorder %s167, %s169
      %p176 = scmp.eq.s32.totalorder %s35, 3
      %p177 = por %p175, %p176
      %p178 = scmp.ne.s32.totalorder %s169, %s170
      %p179 = scmp.eq.s32.totalorder %s35, 0
      %p180 = por %p178, %p179
      %p181 = scmp.ne.s32.totalorder %s169, %s170
      %p182 = scmp.eq.s32.totalorder %s36, 3
      %p183 = por %p181, %p182
      %p185 = scmp.ne.s32.totalorder %s170, %s184
      %p186 = scmp.eq.s32.totalorder %s36, 0
      %p187 = por %p185, %p186
      %s189 = sadd.s32 %s188, 1
      %p192 = scmp.eq.s32.totalorder %s30, 3
      %p193 = scmp.ne.s32.totalorder %s188, %s190
      %p194 = scmp.eq.s32.totalorder %s30, 0
      %p195 = por %p193, %p194
      %p196 = scmp.ne.s32.totalorder %s188, %s190
      %p197 = scmp.eq.s32.totalorder %s35, 3
      %p198 = por %p196, %p197
      %p199 = scmp.ne.s32.totalorder %s190, %s191
      %p200 = scmp.eq.s32.totalorder %s35, 0
      %p201 = por %p199, %p200
      %p202 = scmp.ne.s32.totalorder %s190, %s191
      %p203 = scmp.eq.s32.totalorder %s36, 3
      %p204 = por %p202, %p203
      %p206 = scmp.ne.s32.totalorder %s191, %s205
      %p207 = scmp.eq.s32.totalorder %s36, 0
      %p208 = por %p206, %p207
      %s210 = sadd.s32 %s209, 1
      %p213 = scmp.eq.s32.totalorder %s30, 3
      %p214 = scmp.ne.s32.totalorder %s209, %s211
      %p215 = scmp.eq.s32.totalorder %s30, 0
      %p216 = por %p214, %p215
      %p217 = scmp.ne.s32.totalorder %s209, %s211
      %p218 = scmp.eq.s32.totalorder %s35, 3
      %p219 = por %p217, %p218
      %p220 = scmp.ne.s32.totalorder %s211, %s212
      %p221 = scmp.eq.s32.totalorder %s35, 0
      %p222 = por %p220, %p221
      %p223 = scmp.ne.s32.totalorder %s211, %s212
      %p224 = scmp.eq.s32.totalorder %s36, 3
      %p225 = por %p223, %p224
      %p227 = scmp.ne.s32.totalorder %s212, %s226
      %p228 = scmp.eq.s32.totalorder %s36, 0
      %p229 = por %p227, %p228
      %s230 = ssub.s32 %s37, %s49
      %p231 = scmp.eq.s32.totalorder %s230, 0
      %s233 = sadd.s32 %s232, 1
      %s234 = scalar_select %p231, %s232, %s233
      %p237 = pneg %p231
      %p238 = scmp.eq.s32.totalorder %s30, 3
      %p239 = por %p237, %p238
      %p240 = scmp.ne.s32.totalorder %s232, %s235
      %p241 = scmp.eq.s32.totalorder %s30, 0
      %p242 = por %p240, %p241
      %p243 = scmp.ne.s32.totalorder %s232, %s235
      %p244 = scmp.eq.s32.totalorder %s35, 3
      %p245 = por %p243, %p244
      %p246 = scmp.ne.s32.totalorder %s235, %s236
      %p247 = scmp.eq.s32.totalorder %s35, 0
      %p248 = por %p246, %p247
      %p249 = scmp.ne.s32.totalorder %s235, %s236
      %p250 = scmp.eq.s32.totalorder %s36, 3
      %p251 = por %p249, %p250
      %p253 = scmp.ne.s32.totalorder %s236, %s252
      %p254 = scmp.eq.s32.totalorder %s36, 0
      %p255 = por %p253, %p254
      %s256 = ssub.s32 %s37, %s49
      %p257 = scmp.eq.s32.totalorder %s256, 0
      %s259 = sadd.s32 %s258, 1
      %s260 = scalar_select %p257, %s258, %s259
      %p263 = pneg %p257
      %p264 = scmp.eq.s32.totalorder %s30, 3
      %p265 = por %p263, %p264
      %p266 = scmp.ne.s32.totalorder %s258, %s261
      %p267 = scmp.eq.s32.totalorder %s30, 0
      %p268 = por %p266, %p267
      %p269 = scmp.ne.s32.totalorder %s258, %s261
      %p270 = scmp.eq.s32.totalorder %s35, 3
      %p271 = por %p269, %p270
      %p272 = scmp.ne.s32.totalorder %s261, %s262
      %p273 = scmp.eq.s32.totalorder %s35, 0
      %p274 = por %p272, %p273
      %p275 = scmp.ne.s32.totalorder %s261, %s262
      %p276 = scmp.eq.s32.totalorder %s36, 3
      %p277 = por %p275, %p276
      %p279 = scmp.ne.s32.totalorder %s262, %s278
      %p280 = scmp.eq.s32.totalorder %s36, 0
      %p281 = por %p279, %p280
      %s282 = ssub.s32 %s37, %s49
      %p283 = scmp.eq.s32.totalorder %s282, 0
      %s285 = sadd.s32 %s284, 1
      %s286 = scalar_select %p283, %s284, %s285
      %p289 = pneg %p283
      %p290 = scmp.eq.s32.totalorder %s30, 3
      %p291 = por %p289, %p290
      %p292 = scmp.ne.s32.totalorder %s284, %s287
      %p293 = scmp.eq.s32.totalorder %s30, 0
      %p294 = por %p292, %p293
      %p295 = scmp.ne.s32.totalorder %s284, %s287
      %p296 = scmp.eq.s32.totalorder %s35, 3
      %p297 = por %p295, %p296
      %p298 = scmp.ne.s32.totalorder %s287, %s288
      %p299 = scmp.eq.s32.totalorder %s35, 0
      %p300 = por %p298, %p299
      %p301 = scmp.ne.s32.totalorder %s287, %s288
      %p302 = scmp.eq.s32.totalorder %s36, 3
      %p303 = por %p301, %p302
      %p305 = scmp.ne.s32.totalorder %s288, %s304
      %p306 = scmp.eq.s32.totalorder %s36, 0
      %p307 = por %p305, %p306
      %p308 = scmp.le.s32.totalorder 1, %s30
      %p309 = scmp.lt.s32.totalorder %s30, 5
      %p310 = pnand %p308, %p309
      %p311 = pneg %p310
      // Predicated region
      $region9: #{tpu_custom_call.1} parent=5 // pred_check
        _
      $region10: #{tpu_custom_call.1} parent=5 // pred_check_branch
        %313 = sbr.rel (%p310) target = $region12
      $region11: #{tpu_custom_call.1} parent=5 // pred_region
        %s314 = ssub.s32 %s30, 1
        // Predicated region
        $region13: #{tpu_custom_call.1} parent=11 // pred_check
          %p315 = pneg %p117
        $region14: #{tpu_custom_call.1} parent=11 // pred_check_branch
          %317 = sbr.rel (%p315) target = $region16
        $region15: #{tpu_custom_call.1} parent=11 // pred_region
          _
        $region16: #{tpu_custom_call.1} parent=11 // pred_fallthru
          _
        // Predicated region
        $region17: #{tpu_custom_call.1} parent=11 // pred_check
          %p318 = pneg %p138
        $region18: #{tpu_custom_call.1} parent=11 // pred_check_branch
          %320 = sbr.rel (%p318) target = $region20
        $region19: #{tpu_custom_call.1} parent=11 // pred_region
          _
        $region20: #{tpu_custom_call.1} parent=11 // pred_fallthru
          _
        // Predicated region
        $region21: #{tpu_custom_call.1} parent=11 // pred_check
          %p321 = pneg %p159
        $region22: #{tpu_custom_call.1} parent=11 // pred_check_branch
          %323 = sbr.rel (%p321) target = $region24
        $region23: #{tpu_custom_call.1} parent=11 // pred_region
          %325 = vsyncadd [#allocation7], 0
          %s326 = sshll.u32 %s4, 4
          %s327 = int_to_ptr.hbm [resolvable:$true] %s326
          %s328 = sshll.u32 [#allocation8], 4
          %s329 = int_to_ptr.vmem [resolvable:$true] %s328
          %334 = dma.hbm_to_vmem [thread:$0]  %s327, 1024, %s329, [#allocation7], 64, 64, 4
        $region24: #{tpu_custom_call.1} parent=11 // pred_fallthru
          _
        // Predicated region
        $region25: #{tpu_custom_call.1} parent=11 // pred_check
          %p335 = pneg %p180
        $region26: #{tpu_custom_call.1} parent=11 // pred_check_branch
          %337 = sbr.rel (%p335) target = $region28
        $region27: #{tpu_custom_call.1} parent=11 // pred_region
          _
        $region28: #{tpu_custom_call.1} parent=11 // pred_fallthru
          _
        // Predicated region
        $region29: #{tpu_custom_call.1} parent=11 // pred_check
          %p338 = pneg %p201
        $region30: #{tpu_custom_call.1} parent=11 // pred_check_branch
          %340 = sbr.rel (%p338) target = $region32
        $region31: #{tpu_custom_call.1} parent=11 // pred_region
          %342 = vsyncadd [#allocation10], 0
          %s343 = sshll.u32 %s6, 4
          %s344 = int_to_ptr.hbm [resolvable:$true] %s343
          %s345 = sshll.u32 [#allocation9], 4
          %s346 = int_to_ptr.vmem [resolvable:$true] %s345
          %351 = dma.hbm_to_vmem [thread:$0]  %s344, 1024, %s346, [#allocation10], 64, 64, 4
        $region32: #{tpu_custom_call.1} parent=11 // pred_fallthru
          _
        // Predicated region
        $region33: #{tpu_custom_call.1} parent=11 // pred_check
          %p352 = pneg %p222
        $region34: #{tpu_custom_call.1} parent=11 // pred_check_branch
          %354 = sbr.rel (%p352) target = $region36
        $region35: #{tpu_custom_call.1} parent=11 // pred_region
          _
        $region36: #{tpu_custom_call.1} parent=11 // pred_fallthru
          _
      $region12: #{tpu_custom_call.1} parent=5 // pred_fallthru
        _
      %p355 = scmp.lt.s32.totalorder %s30, 4
      // Predicated region
      $region37: #{tpu_custom_call.1} parent=5 // pred_check
        %p356 = pneg %p355
      $region38: #{tpu_custom_call.1} parent=5 // pred_check_branch
        %358 = sbr.rel (%p356) target = $region40
      $region39: #{tpu_custom_call.1} parent=5 // pred_region
        // Predicated region
        $region41: #{tpu_custom_call.1} parent=39 // pred_check
          %p359 = pneg %p64
        $region42: #{tpu_custom_call.1} parent=39 // pred_check_branch
          %361 = sbr.rel (%p359) target = $region44
        $region43: #{tpu_custom_call.1} parent=39 // pred_region
          %s362 = sand.u32 %s54, 1
          %s363 = scalar_lea.sflag [#allocation4], %s362
          %s364 = sand.u32 %s54, 1
          %s365 = smul.addr %s364, 64
          %s366 = scalar_lea.vmem [#allocation3], %s365
          %s367 = smul.u32 16, %s37
          %369 = vsyncadd %s363, 0
          %s370 = smul.addr %s367, 2
          %s371 = sadd.s32 %s38, %s370
          %s372 = smul.addr %s371, 4
          %s373 = scalar_lea.hbm %s0, %s372
          %s374 = sshll.u32 %s373, 4
          %s375 = int_to_ptr.hbm [resolvable:$true] %s374
          %s376 = sshll.u32 %s366, 4
          %s377 = int_to_ptr.vmem [resolvable:$true] %s376
          %382 = dma.hbm_to_vmem [thread:$0]  %s375, 1024, %s377, %s363, 128, 64, 4
        $region44: #{tpu_custom_call.1} parent=39 // pred_fallthru
          _
        // Predicated region
        $region45: #{tpu_custom_call.1} parent=39 // pred_check
          %p383 = pneg %p90
        $region46: #{tpu_custom_call.1} parent=39 // pred_check_branch
          %385 = sbr.rel (%p383) target = $region48
        $region47: #{tpu_custom_call.1} parent=39 // pred_region
          %s386 = sand.u32 %s30, 1
          %s387 = scalar_lea.sflag [#allocation7], %s386
          %s388 = sand.u32 %s80, 1
          %s389 = smul.addr %s388, 128
          %s390 = scalar_lea.vmem [#allocation6], %s389
          %s391 = smul.u32 16, %s38
          %393 = vsyncadd %s387, 0
          %s394 = smul.addr %s391, 8
          %s395 = scalar_lea.hbm %s1, %s394
          %s396 = sshll.u32 %s395, 4
          %s397 = int_to_ptr.hbm [resolvable:$true] %s396
          %s398 = sshll.u32 %s390, 4
          %s399 = int_to_ptr.vmem [resolvable:$true] %s398
          %404 = dma.hbm_to_vmem [thread:$0]  %s397, 2048, %s399, %s387, 128, 128, 8
        $region48: #{tpu_custom_call.1} parent=39 // pred_fallthru
          _
      $region40: #{tpu_custom_call.1} parent=5 // pred_fallthru
        _
      %p405 = scmp.le.s32.totalorder 1, %s30
      %p406 = scmp.lt.s32.totalorder %s30, 5
      %p407 = pnand %p405, %p406
      %p408 = pneg %p407
      // Predicated region
      $region49: #{tpu_custom_call.1} parent=5 // pred_check
        _
      $region50: #{tpu_custom_call.1} parent=5 // pred_check_branch
        %410 = sbr.rel (%p407) target = $region52
      $region51: #{tpu_custom_call.1} parent=5 // pred_region
        %s411 = ssub.s32 %s30, 1
        %s412 = sand.u32 %s57, 1
        %s413 = scalar_lea.sflag [#allocation4], %s412
        %s414 = sand.u32 %s57, 1
        %s415 = smul.addr %s414, 64
        %s416 = scalar_lea.vmem [#allocation3], %s415
        // Predicated region
        $region53: #{tpu_custom_call.1} parent=51 // pred_check
          %p417 = pneg %p70
        $region54: #{tpu_custom_call.1} parent=51 // pred_check_branch
          %419 = sbr.rel (%p417) target = $region56
        $region55: #{tpu_custom_call.1} parent=51 // pred_region
          %421 = dma.done %s413, 1024
        $region56: #{tpu_custom_call.1} parent=51 // pred_fallthru
          _
        %s422 = sand.u32 %s35, 1
        %s423 = scalar_lea.sflag [#allocation7], %s422
        %s424 = sand.u32 %s83, 1
        %s425 = smul.addr %s424, 128
        %s426 = scalar_lea.vmem [#allocation6], %s425
        // Predicated region
        $region57: #{tpu_custom_call.1} parent=51 // pred_check
          %p427 = pneg %p96
        $region58: #{tpu_custom_call.1} parent=51 // pred_check_branch
          %429 = sbr.rel (%p427) target = $region60
        $region59: #{tpu_custom_call.1} parent=51 // pred_region
          %431 = dma.done %s423, 2048
        $region60: #{tpu_custom_call.1} parent=51 // pred_fallthru
          _
        // Predicated region
        $region61: #{tpu_custom_call.1} parent=51 // pred_check
          %p432 = pneg %p159
        $region62: #{tpu_custom_call.1} parent=51 // pred_check_branch
          %434 = sbr.rel (%p432) target = $region64
        $region63: #{tpu_custom_call.1} parent=51 // pred_region
          %436 = dma.done [#allocation7], 1024
        $region64: #{tpu_custom_call.1} parent=51 // pred_fallthru
          _
        // Predicated region
        $region65: #{tpu_custom_call.1} parent=51 // pred_check
          %p437 = pneg %p201
        $region66: #{tpu_custom_call.1} parent=51 // pred_check_branch
          %439 = sbr.rel (%p437) target = $region68
        $region67: #{tpu_custom_call.1} parent=51 // pred_region
          %441 = dma.done [#allocation10], 1024
        $region68: #{tpu_custom_call.1} parent=51 // pred_fallthru
          _
        %s442 = sand.u32 %s57, 1
        %s443 = scalar_lea.sflag [#allocation4], %s442
        %s444 = sand.u32 %s57, 1
        %s445 = smul.addr %s444, 64
        %s446 = scalar_lea.vmem [#allocation3], %s445
        %p447 = pneg %p70
        %p448 = pneg %p67
        %s449 = sand.u32 %s35, 1
        %s450 = scalar_lea.sflag [#allocation7], %s449
        %s451 = sand.u32 %s83, 1
        %s452 = smul.addr %s451, 128
        %s453 = scalar_lea.vmem [#allocation6], %s452
        %p454 = pneg %p96
        %p455 = pneg %p93
        %p456 = pneg %p117
        %p457 = pneg %p114
        %p458 = pneg %p138
        %p459 = pneg %p135
        %p460 = pneg %p159
        %p461 = pneg %p156
        %p462 = pneg %p180
        %p463 = pneg %p177
        %p464 = pneg %p201
        %p465 = pneg %p198
        %p466 = pneg %p222
        %p467 = pneg %p219
        %p468 = pneg %p248
        %p469 = pneg %p245
        %s470 = sand.u32 %s235, 1
        %s471 = scalar_lea.sflag [#allocation5], %s470
        %s472 = sand.u32 %s235, 1
        %s473 = smul.addr %s472, 128
        %s474 = scalar_lea.vmem [#allocation11], %s473
        %p475 = pneg %p274
        %p476 = pneg %p271
        %s477 = sand.u32 %s35, 1
        %s478 = scalar_lea.sflag [#allocation13], %s477
        %s479 = sand.u32 %s261, 1
        %s480 = scalar_lea.vmem [#allocation12], %s479
        %p481 = pneg %p300
        %p482 = pneg %p297
        %s483 = sand.u32 %s35, 1
        %s484 = scalar_lea.sflag [#allocation13], %s483
        %s485 = sand.u32 %s287, 1
        %s486 = scalar_lea.vmem [#allocation14], %s485
        %s487 = smul.u32 16, %s39
        %s488 = smul.u32 16, %s40
        %s489 = smul.u32 16, %s39
        %p490 = scmp.eq.s32.totalorder %s40, 0
        // Predicated region
        $region69: #{tpu_custom_call.1} parent=51 // pred_check
          %p491 = pneg %p490
        $region70: #{tpu_custom_call.1} parent=51 // pred_check_branch
          %493 = sbr.rel (%p491) target = $region72
        $region71: #{tpu_custom_call.1} parent=51 // pred_region
          %494 = vst [vmem:[#allocation2] sm:$0xff] 0.0
          %495 = vst [vmem:[#allocation2 + $0x8] sm:$0xff] 0.0
          %496 = vst [vmem:[#allocation2 + $0x10] sm:$0xff] 0.0
          %497 = vst [vmem:[#allocation2 + $0x18] sm:$0xff] 0.0
          %498 = vst [vmem:[#allocation2 + $0x20] sm:$0xff] 0.0
          %499 = vst [vmem:[#allocation2 + $0x28] sm:$0xff] 0.0
          %500 = vst [vmem:[#allocation2 + $0x30] sm:$0xff] 0.0
          %501 = vst [vmem:[#allocation2 + $0x38] sm:$0xff] 0.0
          %502 = vst [vmem:[#allocation2 + $0x40] sm:$0xff] 0.0
          %503 = vst [vmem:[#allocation2 + $0x48] sm:$0xff] 0.0
          %504 = vst [vmem:[#allocation2 + $0x50] sm:$0xff] 0.0
          %505 = vst [vmem:[#allocation2 + $0x58] sm:$0xff] 0.0
          %506 = vst [vmem:[#allocation2 + $0x60] sm:$0xff] 0.0
          %507 = vst [vmem:[#allocation2 + $0x68] sm:$0xff] 0.0
          %508 = vst [vmem:[#allocation2 + $0x70] sm:$0xff] 0.0
          %509 = vst [vmem:[#allocation2 + $0x78] sm:$0xff] 0.0
        $region72: #{tpu_custom_call.1} parent=51 // pred_fallthru
          _
        %v510 = vld [vmem:[%s426] sm:$0xff]
        %v511 = vld [vmem:[%s426 + $0x8] sm:$0xff]
        %v512 = vld [vmem:[%s426 + $0x10] sm:$0xff]
        %v513 = vld [vmem:[%s426 + $0x18] sm:$0xff]
        %v514 = vld [vmem:[%s426 + $0x20] sm:$0xff]
        %v515 = vld [vmem:[%s426 + $0x28] sm:$0xff]
        %v516 = vld [vmem:[%s426 + $0x30] sm:$0xff]
        %v517 = vld [vmem:[%s426 + $0x38] sm:$0xff]
        %v518 = vld [vmem:[%s426 + $0x40] sm:$0xff]
        %v519 = vld [vmem:[%s426 + $0x48] sm:$0xff]
        %v520 = vld [vmem:[%s426 + $0x50] sm:$0xff]
        %v521 = vld [vmem:[%s426 + $0x58] sm:$0xff]
        %v522 = vld [vmem:[%s426 + $0x60] sm:$0xff]
        %v523 = vld [vmem:[%s426 + $0x68] sm:$0xff]
        %v524 = vld [vmem:[%s426 + $0x70] sm:$0xff]
        %v525 = vld [vmem:[%s426 + $0x78] sm:$0xff]
        %v526 = vld [vmem:[%s2] sm:$0x1]
        %v528 = vperm.slane %v526, 0
        %v530 = vmul.f32 %v510, %v528
        %v531 = vmul.f32 %v511, %v528
        %v532 = vmul.f32 %v512, %v528
        %v533 = vmul.f32 %v513, %v528
        %v534 = vmul.f32 %v514, %v528
        %v535 = vmul.f32 %v515, %v528
        %v536 = vmul.f32 %v516, %v528
        %v537 = vmul.f32 %v517, %v528
        %v538 = vmul.f32 %v518, %v528
        %v539 = vmul.f32 %v519, %v528
        %v540 = vmul.f32 %v520, %v528
        %v541 = vmul.f32 %v521, %v528
        %v542 = vmul.f32 %v522, %v528
        %v543 = vmul.f32 %v523, %v528
        %v544 = vmul.f32 %v524, %v528
        %v545 = vmul.f32 %v525, %v528
        %v546 = vld [vmem:[%s3] sm:$0x1]
        %v548 = vperm.slane %v546, 0
        %v550 = vadd.f32 %v530, %v548
        %v551 = vadd.f32 %v531, %v548
        %v552 = vadd.f32 %v532, %v548
        %v553 = vadd.f32 %v533, %v548
        %v554 = vadd.f32 %v534, %v548
        %v555 = vadd.f32 %v535, %v548
        %v556 = vadd.f32 %v536, %v548
        %v557 = vadd.f32 %v537, %v548
        %v558 = vadd.f32 %v538, %v548
        %v559 = vadd.f32 %v539, %v548
        %v560 = vadd.f32 %v540, %v548
        %v561 = vadd.f32 %v541, %v548
        %v562 = vadd.f32 %v542, %v548
        %v563 = vadd.f32 %v543, %v548
        %v564 = vadd.f32 %v544, %v548
        %v565 = vadd.f32 %v545, %v548
        %v566 = vld [vmem:[#allocation2] sm:$0xff]
        %v567 = vld [vmem:[#allocation2 + $0x8] sm:$0xff]
        %v568 = vld [vmem:[#allocation2 + $0x10] sm:$0xff]
        %v569 = vld [vmem:[#allocation2 + $0x18] sm:$0xff]
        %v570 = vld [vmem:[#allocation2 + $0x20] sm:$0xff]
        %v571 = vld [vmem:[#allocation2 + $0x28] sm:$0xff]
        %v572 = vld [vmem:[#allocation2 + $0x30] sm:$0xff]
        %v573 = vld [vmem:[#allocation2 + $0x38] sm:$0xff]
        %v574 = vld [vmem:[#allocation2 + $0x40] sm:$0xff]
        %v575 = vld [vmem:[#allocation2 + $0x48] sm:$0xff]
        %v576 = vld [vmem:[#allocation2 + $0x50] sm:$0xff]
        %v577 = vld [vmem:[#allocation2 + $0x58] sm:$0xff]
        %v578 = vld [vmem:[#allocation2 + $0x60] sm:$0xff]
        %v579 = vld [vmem:[#allocation2 + $0x68] sm:$0xff]
        %v580 = vld [vmem:[#allocation2 + $0x70] sm:$0xff]
        %v581 = vld [vmem:[#allocation2 + $0x78] sm:$0xff]
        %v582 = vld [vmem:[%s416] sm:$0xf]
        %v583 = vld [vmem:[%s416 + $0x4] sm:$0xf]
        %v584 = vld [vmem:[%s416 + $0x8] sm:$0xf]
        %v585 = vld [vmem:[%s416 + $0xc] sm:$0xf]
        %v586 = vld [vmem:[%s416 + $0x10] sm:$0xf]
        %v587 = vld [vmem:[%s416 + $0x14] sm:$0xf]
        %v588 = vld [vmem:[%s416 + $0x18] sm:$0xf]
        %v589 = vld [vmem:[%s416 + $0x1c] sm:$0xf]
        %v590 = vld [vmem:[%s416 + $0x20] sm:$0xf]
        %v591 = vld [vmem:[%s416 + $0x24] sm:$0xf]
        %v592 = vld [vmem:[%s416 + $0x28] sm:$0xf]
        %v593 = vld [vmem:[%s416 + $0x2c] sm:$0xf]
        %v594 = vld [vmem:[%s416 + $0x30] sm:$0xf]
        %v595 = vld [vmem:[%s416 + $0x34] sm:$0xf]
        %v596 = vld [vmem:[%s416 + $0x38] sm:$0xf]
        %v597 = vld [vmem:[%s416 + $0x3c] sm:$0xf]
        %v598 = vpack.c.bf16 %v551, %v550
        %v599 = vpack.c.bf16 %v553, %v552
        %v600 = vpack.c.bf16 %v555, %v554
        %v601 = vpack.c.bf16 %v557, %v556
        %v602 = vpack.c.bf16 %v559, %v558
        %v603 = vpack.c.bf16 %v561, %v560
        %v604 = vpack.c.bf16 %v563, %v562
        %v605 = vpack.c.bf16 %v565, %v564
        %v622 = vunpack.c.l.b16 %v582
        %v623 = vunpack.c.l.b16 %v583
        %v624 = vunpack.c.l.b16 %v584
        %v625 = vunpack.c.l.b16 %v585
        %v626 = vunpack.c.l.b16 %v586
        %v627 = vunpack.c.l.b16 %v587
        %v628 = vunpack.c.l.b16 %v588
        %v629 = vunpack.c.l.b16 %v589
        %v630 = vunpack.c.l.b16 %v590
        %v631 = vunpack.c.l.b16 %v591
        %v632 = vunpack.c.l.b16 %v592
        %v633 = vunpack.c.l.b16 %v593
        %v634 = vunpack.c.l.b16 %v594
        %v635 = vunpack.c.l.b16 %v595
        %v636 = vunpack.c.l.b16 %v596
        %v637 = vunpack.c.l.b16 %v597
        %v638 = vpack.c.b16 %v623, %v622
        %v639 = vpack.c.b16 %v625, %v624
        %v640 = vpack.c.b16 %v627, %v626
        %v641 = vpack.c.b16 %v629, %v628
        %v642 = vpack.c.b16 %v631, %v630
        %v643 = vpack.c.b16 %v633, %v632
        %v644 = vpack.c.b16 %v635, %v634
        %v645 = vpack.c.b16 %v637, %v636
        %654 = vmatpush.bf16.msra.mxu0 %v605
        %655 = vmatpush.bf16.msra.mxu0 %v604
        %656 = vmatpush.bf16.msra.mxu0 %v603
        %657 = vmatpush.bf16.msra.mxu0 %v602
        %658 = vmatpush.bf16.msra.mxu0 %v601
        %659 = vmatpush.bf16.msra.mxu0 %v600
        %660 = vmatpush.bf16.msra.mxu0 %v599
        %661 = vmatpush.bf16.msra.mxu0 %v598
        %662 = vmatmul.bf16.gmra.mxu0 %v638
        %v663 = vpop.f32.mrf.mxu0
        %v664 = vadd.f32 0.0, %v663
        %v665 = vpop.f32.mrf.mxu0
        %v666 = vadd.f32 0.0, %v665
        %667 = vmatmul.bf16.gmra.mxu0 %v639
        %v668 = vpop.f32.mrf.mxu0
        %v669 = vadd.f32 0.0, %v668
        %v670 = vpop.f32.mrf.mxu0
        %v671 = vadd.f32 0.0, %v670
        %672 = vmatmul.bf16.gmra.mxu0 %v640
        %v673 = vpop.f32.mrf.mxu0
        %v674 = vadd.f32 0.0, %v673
        %v675 = vpop.f32.mrf.mxu0
        %v676 = vadd.f32 0.0, %v675
        %677 = vmatmul.bf16.gmra.mxu0 %v641
        %v678 = vpop.f32.mrf.mxu0
        %v679 = vadd.f32 0.0, %v678
        %v680 = vpop.f32.mrf.mxu0
        %v681 = vadd.f32 0.0, %v680
        %682 = vmatmul.bf16.gmra.mxu0 %v642
        %v683 = vpop.f32.mrf.mxu0
        %v684 = vadd.f32 0.0, %v683
        %v685 = vpop.f32.mrf.mxu0
        %v686 = vadd.f32 0.0, %v685
        %687 = vmatmul.bf16.gmra.mxu0 %v643
        %v688 = vpop.f32.mrf.mxu0
        %v689 = vadd.f32 0.0, %v688
        %v690 = vpop.f32.mrf.mxu0
        %v691 = vadd.f32 0.0, %v690
        %692 = vmatmul.bf16.gmra.mxu0 %v644
        %v693 = vpop.f32.mrf.mxu0
        %v694 = vadd.f32 0.0, %v693
        %v695 = vpop.f32.mrf.mxu0
        %v696 = vadd.f32 0.0, %v695
        %697 = vmatmul.bf16.gmra.mxu0 %v645
        %v698 = vpop.f32.mrf.mxu0
        %v699 = vadd.f32 0.0, %v698
        %v700 = vpop.f32.mrf.mxu0
        %v701 = vadd.f32 0.0, %v700
        %702 = vdwg.mxu0
        %v703 = vadd.f32 %v566, %v664
        %v704 = vadd.f32 %v567, %v666
        %v705 = vadd.f32 %v568, %v669
        %v706 = vadd.f32 %v569, %v671
        %v707 = vadd.f32 %v570, %v674
        %v708 = vadd.f32 %v571, %v676
        %v709 = vadd.f32 %v572, %v679
        %v710 = vadd.f32 %v573, %v681
        %v711 = vadd.f32 %v574, %v684
        %v712 = vadd.f32 %v575, %v686
        %v713 = vadd.f32 %v576, %v689
        %v714 = vadd.f32 %v577, %v691
        %v715 = vadd.f32 %v578, %v694
        %v716 = vadd.f32 %v579, %v696
        %v717 = vadd.f32 %v580, %v699
        %v718 = vadd.f32 %v581, %v701
        %719 = vst [vmem:[#allocation2] sm:$0xff] %v703
        %720 = vst [vmem:[#allocation2 + $0x8] sm:$0xff] %v704
        %721 = vst [vmem:[#allocation2 + $0x10] sm:$0xff] %v705
        %722 = vst [vmem:[#allocation2 + $0x18] sm:$0xff] %v706
        %723 = vst [vmem:[#allocation2 + $0x20] sm:$0xff] %v707
        %724 = vst [vmem:[#allocation2 + $0x28] sm:$0xff] %v708
        %725 = vst [vmem:[#allocation2 + $0x30] sm:$0xff] %v709
        %726 = vst [vmem:[#allocation2 + $0x38] sm:$0xff] %v710
        %727 = vst [vmem:[#allocation2 + $0x40] sm:$0xff] %v711
        %728 = vst [vmem:[#allocation2 + $0x48] sm:$0xff] %v712
        %729 = vst [vmem:[#allocation2 + $0x50] sm:$0xff] %v713
        %730 = vst [vmem:[#allocation2 + $0x58] sm:$0xff] %v714
        %731 = vst [vmem:[#allocation2 + $0x60] sm:$0xff] %v715
        %732 = vst [vmem:[#allocation2 + $0x68] sm:$0xff] %v716
        %733 = vst [vmem:[#allocation2 + $0x70] sm:$0xff] %v717
        %734 = vst [vmem:[#allocation2 + $0x78] sm:$0xff] %v718
        %p735 = scmp.eq.s32.totalorder %s40, 1
        // Predicated region
        $region73: #{tpu_custom_call.1} parent=51 // pred_check
          %p736 = pneg %p735
        $region74: #{tpu_custom_call.1} parent=51 // pred_check_branch
          %738 = sbr.rel (%p736) target = $region76
        $region75: #{tpu_custom_call.1} parent=51 // pred_region
          %v739 = vld [vmem:[#allocation2] sm:$0xff]
          %v740 = vld [vmem:[#allocation2 + $0x8] sm:$0xff]
          %v741 = vld [vmem:[#allocation2 + $0x10] sm:$0xff]
          %v742 = vld [vmem:[#allocation2 + $0x18] sm:$0xff]
          %v743 = vld [vmem:[#allocation2 + $0x20] sm:$0xff]
          %v744 = vld [vmem:[#allocation2 + $0x28] sm:$0xff]
          %v745 = vld [vmem:[#allocation2 + $0x30] sm:$0xff]
          %v746 = vld [vmem:[#allocation2 + $0x38] sm:$0xff]
          %v747 = vld [vmem:[#allocation2 + $0x40] sm:$0xff]
          %v748 = vld [vmem:[#allocation2 + $0x48] sm:$0xff]
          %v749 = vld [vmem:[#allocation2 + $0x50] sm:$0xff]
          %v750 = vld [vmem:[#allocation2 + $0x58] sm:$0xff]
          %v751 = vld [vmem:[#allocation2 + $0x60] sm:$0xff]
          %v752 = vld [vmem:[#allocation2 + $0x68] sm:$0xff]
          %v753 = vld [vmem:[#allocation2 + $0x70] sm:$0xff]
          %v754 = vld [vmem:[#allocation2 + $0x78] sm:$0xff]
          %v755 = vpack.c.bf16 %v740, %v739
          %v756 = vpack.c.bf16 %v742, %v741
          %v757 = vpack.c.bf16 %v744, %v743
          %v758 = vpack.c.bf16 %v746, %v745
          %v759 = vpack.c.bf16 %v748, %v747
          %v760 = vpack.c.bf16 %v750, %v749
          %v761 = vpack.c.bf16 %v752, %v751
          %v762 = vpack.c.bf16 %v754, %v753
          %v763 = vld [vmem:[#allocation8] sm:$0xf]
          %v764 = vld [vmem:[#allocation8 + $0x4] sm:$0xf]
          %v765 = vld [vmem:[#allocation8 + $0x8] sm:$0xf]
          %v766 = vld [vmem:[#allocation8 + $0xc] sm:$0xf]
          %v767 = vld [vmem:[#allocation8 + $0x10] sm:$0xf]
          %v768 = vld [vmem:[#allocation8 + $0x14] sm:$0xf]
          %v769 = vld [vmem:[#allocation8 + $0x18] sm:$0xf]
          %v770 = vld [vmem:[#allocation8 + $0x1c] sm:$0xf]
          %v771 = vld [vmem:[#allocation8 + $0x20] sm:$0xf]
          %v772 = vld [vmem:[#allocation8 + $0x24] sm:$0xf]
          %v773 = vld [vmem:[#allocation8 + $0x28] sm:$0xf]
          %v774 = vld [vmem:[#allocation8 + $0x2c] sm:$0xf]
          %v775 = vld [vmem:[#allocation8 + $0x30] sm:$0xf]
          %v776 = vld [vmem:[#allocation8 + $0x34] sm:$0xf]
          %v777 = vld [vmem:[#allocation8 + $0x38] sm:$0xf]
          %v778 = vld [vmem:[#allocation8 + $0x3c] sm:$0xf]
          %v779 = vld [vmem:[%s5] sm:$0x1]
          %v781 = vperm.slane %v779, 0
          %v799 = vunpack.c.l.b16 %v763
          %v800 = vunpack.c.l.b16 %v764
          %v801 = vunpack.c.l.b16 %v765
          %v802 = vunpack.c.l.b16 %v766
          %v803 = vunpack.c.l.b16 %v767
          %v804 = vunpack.c.l.b16 %v768
          %v805 = vunpack.c.l.b16 %v769
          %v806 = vunpack.c.l.b16 %v770
          %v807 = vunpack.c.l.b16 %v771
          %v808 = vunpack.c.l.b16 %v772
          %v809 = vunpack.c.l.b16 %v773
          %v810 = vunpack.c.l.b16 %v774
          %v811 = vunpack.c.l.b16 %v775
          %v812 = vunpack.c.l.b16 %v776
          %v813 = vunpack.c.l.b16 %v777
          %v814 = vunpack.c.l.b16 %v778
          %v815 = vpack.c.b16 %v800, %v799
          %v816 = vpack.c.b16 %v802, %v801
          %v817 = vpack.c.b16 %v804, %v803
          %v818 = vpack.c.b16 %v806, %v805
          %v819 = vpack.c.b16 %v808, %v807
          %v820 = vpack.c.b16 %v810, %v809
          %v821 = vpack.c.b16 %v812, %v811
          %v822 = vpack.c.b16 %v814, %v813
          %831 = vmatpush.bf16.msra.mxu0 %v822
          %832 = vmatpush.bf16.msra.mxu0 %v821
          %833 = vmatpush.bf16.msra.mxu0 %v820
          %834 = vmatpush.bf16.msra.mxu0 %v819
          %835 = vmatpush.bf16.msra.mxu0 %v818
          %836 = vmatpush.bf16.msra.mxu0 %v817
          %837 = vmatpush.bf16.msra.mxu0 %v816
          %838 = vmatpush.bf16.msra.mxu0 %v815
          %839 = vmatmul.bf16.gmra.mxu0 %v755
          %v840 = vpop.f32.mrf.mxu0
          %v841 = vadd.f32 %v781, %v840
          %v842 = vpop.f32.mrf.mxu0
          %v843 = vadd.f32 %v781, %v842
          %844 = vmatmul.bf16.gmra.mxu0 %v756
          %v845 = vpop.f32.mrf.mxu0
          %v846 = vadd.f32 %v781, %v845
          %v847 = vpop.f32.mrf.mxu0
          %v848 = vadd.f32 %v781, %v847
          %849 = vmatmul.bf16.gmra.mxu0 %v757
          %v850 = vpop.f32.mrf.mxu0
          %v851 = vadd.f32 %v781, %v850
          %v852 = vpop.f32.mrf.mxu0
          %v853 = vadd.f32 %v781, %v852
          %854 = vmatmul.bf16.gmra.mxu0 %v758
          %v855 = vpop.f32.mrf.mxu0
          %v856 = vadd.f32 %v781, %v855
          %v857 = vpop.f32.mrf.mxu0
          %v858 = vadd.f32 %v781, %v857
          %859 = vmatmul.bf16.gmra.mxu0 %v759
          %v860 = vpop.f32.mrf.mxu0
          %v861 = vadd.f32 %v781, %v860
          %v862 = vpop.f32.mrf.mxu0
          %v863 = vadd.f32 %v781, %v862
          %864 = vmatmul.bf16.gmra.mxu0 %v760
          %v865 = vpop.f32.mrf.mxu0
          %v866 = vadd.f32 %v781, %v865
          %v867 = vpop.f32.mrf.mxu0
          %v868 = vadd.f32 %v781, %v867
          %869 = vmatmul.bf16.gmra.mxu0 %v761
          %v870 = vpop.f32.mrf.mxu0
          %v871 = vadd.f32 %v781, %v870
          %v872 = vpop.f32.mrf.mxu0
          %v873 = vadd.f32 %v781, %v872
          %874 = vmatmul.bf16.gmra.mxu0 %v762
          %v875 = vpop.f32.mrf.mxu0
          %v876 = vadd.f32 %v781, %v875
          %v877 = vpop.f32.mrf.mxu0
          %v878 = vadd.f32 %v781, %v877
          %879 = vdwg.mxu0
          %v880 = vmax.f32 %v841, 0.0
          %v881 = vmax.f32 %v843, 0.0
          %v882 = vmax.f32 %v846, 0.0
          %v883 = vmax.f32 %v848, 0.0
          %v884 = vmax.f32 %v851, 0.0
          %v885 = vmax.f32 %v853, 0.0
          %v886 = vmax.f32 %v856, 0.0
          %v887 = vmax.f32 %v858, 0.0
          %v888 = vmax.f32 %v861, 0.0
          %v889 = vmax.f32 %v863, 0.0
          %v890 = vmax.f32 %v866, 0.0
          %v891 = vmax.f32 %v868, 0.0
          %v892 = vmax.f32 %v871, 0.0
          %v893 = vmax.f32 %v873, 0.0
          %v894 = vmax.f32 %v876, 0.0
          %v895 = vmax.f32 %v878, 0.0
          %v896 = vpack.c.bf16 %v881, %v880
          %v897 = vpack.c.bf16 %v883, %v882
          %v898 = vpack.c.bf16 %v885, %v884
          %v899 = vpack.c.bf16 %v887, %v886
          %v900 = vpack.c.bf16 %v889, %v888
          %v901 = vpack.c.bf16 %v891, %v890
          %v902 = vpack.c.bf16 %v893, %v892
          %v903 = vpack.c.bf16 %v895, %v894
          %v904 = vld [vmem:[#allocation9] sm:$0xf]
          %v905 = vld [vmem:[#allocation9 + $0x4] sm:$0xf]
          %v906 = vld [vmem:[#allocation9 + $0x8] sm:$0xf]
          %v907 = vld [vmem:[#allocation9 + $0xc] sm:$0xf]
          %v908 = vld [vmem:[#allocation9 + $0x10] sm:$0xf]
          %v909 = vld [vmem:[#allocation9 + $0x14] sm:$0xf]
          %v910 = vld [vmem:[#allocation9 + $0x18] sm:$0xf]
          %v911 = vld [vmem:[#allocation9 + $0x1c] sm:$0xf]
          %v912 = vld [vmem:[#allocation9 + $0x20] sm:$0xf]
          %v913 = vld [vmem:[#allocation9 + $0x24] sm:$0xf]
          %v914 = vld [vmem:[#allocation9 + $0x28] sm:$0xf]
          %v915 = vld [vmem:[#allocation9 + $0x2c] sm:$0xf]
          %v916 = vld [vmem:[#allocation9 + $0x30] sm:$0xf]
          %v917 = vld [vmem:[#allocation9 + $0x34] sm:$0xf]
          %v918 = vld [vmem:[#allocation9 + $0x38] sm:$0xf]
          %v919 = vld [vmem:[#allocation9 + $0x3c] sm:$0xf]
          %v920 = vld [vmem:[%s7] sm:$0x1]
          %v922 = vperm.slane %v920, 0
          %v940 = vunpack.c.l.b16 %v904
          %v941 = vunpack.c.l.b16 %v905
          %v942 = vunpack.c.l.b16 %v906
          %v943 = vunpack.c.l.b16 %v907
          %v944 = vunpack.c.l.b16 %v908
          %v945 = vunpack.c.l.b16 %v909
          %v946 = vunpack.c.l.b16 %v910
          %v947 = vunpack.c.l.b16 %v911
          %v948 = vunpack.c.l.b16 %v912
          %v949 = vunpack.c.l.b16 %v913
          %v950 = vunpack.c.l.b16 %v914
          %v951 = vunpack.c.l.b16 %v915
          %v952 = vunpack.c.l.b16 %v916
          %v953 = vunpack.c.l.b16 %v917
          %v954 = vunpack.c.l.b16 %v918
          %v955 = vunpack.c.l.b16 %v919
          %v956 = vpack.c.b16 %v941, %v940
          %v957 = vpack.c.b16 %v943, %v942
          %v958 = vpack.c.b16 %v945, %v944
          %v959 = vpack.c.b16 %v947, %v946
          %v960 = vpack.c.b16 %v949, %v948
          %v961 = vpack.c.b16 %v951, %v950
          %v962 = vpack.c.b16 %v953, %v952
          %v963 = vpack.c.b16 %v955, %v954
          %972 = vmatpush.bf16.msra.mxu0 %v963
          %973 = vmatpush.bf16.msra.mxu0 %v962
          %974 = vmatpush.bf16.msra.mxu0 %v961
          %975 = vmatpush.bf16.msra.mxu0 %v960
          %976 = vmatpush.bf16.msra.mxu0 %v959
          %977 = vmatpush.bf16.msra.mxu0 %v958
          %978 = vmatpush.bf16.msra.mxu0 %v957
          %979 = vmatpush.bf16.msra.mxu0 %v956
          %980 = vmatmul.bf16.gmra.mxu0 %v896
          %v981 = vpop.f32.mrf.mxu0
          %v982 = vadd.f32 %v922, %v981
          %v983 = vpop.f32.mrf.mxu0
          %v984 = vadd.f32 %v922, %v983
          %985 = vmatmul.bf16.gmra.mxu0 %v897
          %v986 = vpop.f32.mrf.mxu0
          %v987 = vadd.f32 %v922, %v986
          %v988 = vpop.f32.mrf.mxu0
          %v989 = vadd.f32 %v922, %v988
          %990 = vmatmul.bf16.gmra.mxu0 %v898
          %v991 = vpop.f32.mrf.mxu0
          %v992 = vadd.f32 %v922, %v991
          %v993 = vpop.f32.mrf.mxu0
          %v994 = vadd.f32 %v922, %v993
          %995 = vmatmul.bf16.gmra.mxu0 %v899
          %v996 = vpop.f32.mrf.mxu0
          %v997 = vadd.f32 %v922, %v996
          %v998 = vpop.f32.mrf.mxu0
          %v999 = vadd.f32 %v922, %v998
          %1000 = vmatmul.bf16.gmra.mxu0 %v900
          %v1001 = vpop.f32.mrf.mxu0
          %v1002 = vadd.f32 %v922, %v1001
          %v1003 = vpop.f32.mrf.mxu0
          %v1004 = vadd.f32 %v922, %v1003
          %1005 = vmatmul.bf16.gmra.mxu0 %v901
          %v1006 = vpop.f32.mrf.mxu0
          %v1007 = vadd.f32 %v922, %v1006
          %v1008 = vpop.f32.mrf.mxu0
          %v1009 = vadd.f32 %v922, %v1008
          %1010 = vmatmul.bf16.gmra.mxu0 %v902
          %v1011 = vpop.f32.mrf.mxu0
          %v1012 = vadd.f32 %v922, %v1011
          %v1013 = vpop.f32.mrf.mxu0
          %v1014 = vadd.f32 %v922, %v1013
          %1015 = vmatmul.bf16.gmra.mxu0 %v903
          %v1016 = vpop.f32.mrf.mxu0
          %v1017 = vadd.f32 %v922, %v1016
          %v1018 = vpop.f32.mrf.mxu0
          %v1019 = vadd.f32 %v922, %v1018
          %1020 = vdwg.mxu0
          %v1021 = vmax.f32 %v982, 0.0
          %v1022 = vmax.f32 %v984, 0.0
          %v1023 = vmax.f32 %v987, 0.0
          %v1024 = vmax.f32 %v989, 0.0
          %v1025 = vmax.f32 %v992, 0.0
          %v1026 = vmax.f32 %v994, 0.0
          %v1027 = vmax.f32 %v997, 0.0
          %v1028 = vmax.f32 %v999, 0.0
          %v1029 = vmax.f32 %v1002, 0.0
          %v1030 = vmax.f32 %v1004, 0.0
          %v1031 = vmax.f32 %v1007, 0.0
          %v1032 = vmax.f32 %v1009, 0.0
          %v1033 = vmax.f32 %v1012, 0.0
          %v1034 = vmax.f32 %v1014, 0.0
          %v1035 = vmax.f32 %v1017, 0.0
          %v1036 = vmax.f32 %v1019, 0.0
          %1037 = vst [vmem:[%s474] sm:$0xff] %v1021
          %1038 = vst [vmem:[%s474 + $0x8] sm:$0xff] %v1022
          %1039 = vst [vmem:[%s474 + $0x10] sm:$0xff] %v1023
          %1040 = vst [vmem:[%s474 + $0x18] sm:$0xff] %v1024
          %1041 = vst [vmem:[%s474 + $0x20] sm:$0xff] %v1025
          %1042 = vst [vmem:[%s474 + $0x28] sm:$0xff] %v1026
          %1043 = vst [vmem:[%s474 + $0x30] sm:$0xff] %v1027
          %1044 = vst [vmem:[%s474 + $0x38] sm:$0xff] %v1028
          %1045 = vst [vmem:[%s474 + $0x40] sm:$0xff] %v1029
          %1046 = vst [vmem:[%s474 + $0x48] sm:$0xff] %v1030
          %1047 = vst [vmem:[%s474 + $0x50] sm:$0xff] %v1031
          %1048 = vst [vmem:[%s474 + $0x58] sm:$0xff] %v1032
          %1049 = vst [vmem:[%s474 + $0x60] sm:$0xff] %v1033
          %1050 = vst [vmem:[%s474 + $0x68] sm:$0xff] %v1034
          %1051 = vst [vmem:[%s474 + $0x70] sm:$0xff] %v1035
          %1052 = vst [vmem:[%s474 + $0x78] sm:$0xff] %v1036
          %v1053 = vlaneseq
          %v1054 = vshrl.u32 %v1053, 7
          %v1055 = vadd.s32 %v1054, 8
          %v1056 = vadd.s32 %v1054, 16
          %v1057 = vadd.s32 %v1054, 24
          %v1058 = vadd.s32 %v1054, 32
          %v1059 = vadd.s32 %v1054, 40
          %v1060 = vadd.s32 %v1054, 48
          %v1061 = vadd.s32 %v1054, 56
          %v1062 = vadd.s32 %v1054, 64
          %v1063 = vadd.s32 %v1054, 72
          %v1064 = vadd.s32 %v1054, 80
          %v1065 = vadd.s32 %v1054, 88
          %v1066 = vadd.s32 %v1054, 96
          %v1067 = vadd.s32 %v1054, 104
          %v1068 = vadd.s32 %v1054, 112
          %v1069 = vadd.s32 %v1054, 120
          %s1070 = smul.u32 %s39, 128
          %v1071 = vstv %s1070
          %v1072 = vadd.s32 %v1054, %v1071
          %v1073 = vadd.s32 %v1055, %v1071
          %v1074 = vadd.s32 %v1056, %v1071
          %v1075 = vadd.s32 %v1057, %v1071
          %v1076 = vadd.s32 %v1058, %v1071
          %v1077 = vadd.s32 %v1059, %v1071
          %v1078 = vadd.s32 %v1060, %v1071
          %v1079 = vadd.s32 %v1061, %v1071
          %v1080 = vadd.s32 %v1062, %v1071
          %v1081 = vadd.s32 %v1063, %v1071
          %v1082 = vadd.s32 %v1064, %v1071
          %v1083 = vadd.s32 %v1065, %v1071
          %v1084 = vadd.s32 %v1066, %v1071
          %v1085 = vadd.s32 %v1067, %v1071
          %v1086 = vadd.s32 %v1068, %v1071
          %v1087 = vadd.s32 %v1069, %v1071
          %vm1088 = vcmp.lt.s32.totalorder %v1072, 200
          %vm1089 = vcmp.lt.s32.totalorder %v1073, 200
          %vm1090 = vcmp.lt.s32.totalorder %v1074, 200
          %vm1091 = vcmp.lt.s32.totalorder %v1075, 200
          %vm1092 = vcmp.lt.s32.totalorder %v1076, 200
          %vm1093 = vcmp.lt.s32.totalorder %v1077, 200
          %vm1094 = vcmp.lt.s32.totalorder %v1078, 200
          %vm1095 = vcmp.lt.s32.totalorder %v1079, 200
          %vm1096 = vcmp.lt.s32.totalorder %v1080, 200
          %vm1097 = vcmp.lt.s32.totalorder %v1081, 200
          %vm1098 = vcmp.lt.s32.totalorder %v1082, 200
          %vm1099 = vcmp.lt.s32.totalorder %v1083, 200
          %vm1100 = vcmp.lt.s32.totalorder %v1084, 200
          %vm1101 = vcmp.lt.s32.totalorder %v1085, 200
          %vm1102 = vcmp.lt.s32.totalorder %v1086, 200
          %vm1103 = vcmp.lt.s32.totalorder %v1087, 200
          %v1104 = vsel %vm1088, %v1021, 0.0
          %v1105 = vsel %vm1089, %v1022, 0.0
          %v1106 = vsel %vm1090, %v1023, 0.0
          %v1107 = vsel %vm1091, %v1024, 0.0
          %v1108 = vsel %vm1092, %v1025, 0.0
          %v1109 = vsel %vm1093, %v1026, 0.0
          %v1110 = vsel %vm1094, %v1027, 0.0
          %v1111 = vsel %vm1095, %v1028, 0.0
          %v1112 = vsel %vm1096, %v1029, 0.0
          %v1113 = vsel %vm1097, %v1030, 0.0
          %v1114 = vsel %vm1098, %v1031, 0.0
          %v1115 = vsel %vm1099, %v1032, 0.0
          %v1116 = vsel %vm1100, %v1033, 0.0
          %v1117 = vsel %vm1101, %v1034, 0.0
          %v1118 = vsel %vm1102, %v1035, 0.0
          %v1119 = vsel %vm1103, %v1036, 0.0
          %v1120 = vadd.f32 %v1104, %v1105
          %v1121 = vadd.f32 %v1120, %v1106
          %v1122 = vadd.f32 %v1121, %v1107
          %v1123 = vadd.f32 %v1122, %v1108
          %v1124 = vadd.f32 %v1123, %v1109
          %v1125 = vadd.f32 %v1124, %v1110
          %v1126 = vadd.f32 %v1125, %v1111
          %v1127 = vadd.f32 %v1126, %v1112
          %v1128 = vadd.f32 %v1127, %v1113
          %v1129 = vadd.f32 %v1128, %v1114
          %v1130 = vadd.f32 %v1129, %v1115
          %v1131 = vadd.f32 %v1130, %v1116
          %v1132 = vadd.f32 %v1131, %v1117
          %v1133 = vadd.f32 %v1132, %v1118
          %v1134 = vadd.f32 %v1133, %v1119
          %v1135 = vrot.slane %v1134, 4
          %v1136 = vadd.f32 %v1134, %v1135
          %v1137 = vrot.slane %v1136, 2
          %v1138 = vadd.f32 %v1136, %v1137
          %v1139 = vrot.slane %v1138, 1
          %v1140 = vadd.f32 %v1138, %v1139
          %1141 = vst [vmem:[%s480] sm:$0x1] %v1140
          %v1142 = vmul.f32 %v1104, %v1104
          %v1143 = vmul.f32 %v1105, %v1105
          %v1144 = vmul.f32 %v1106, %v1106
          %v1145 = vmul.f32 %v1107, %v1107
          %v1146 = vmul.f32 %v1108, %v1108
          %v1147 = vmul.f32 %v1109, %v1109
          %v1148 = vmul.f32 %v1110, %v1110
          %v1149 = vmul.f32 %v1111, %v1111
          %v1150 = vmul.f32 %v1112, %v1112
          %v1151 = vmul.f32 %v1113, %v1113
          %v1152 = vmul.f32 %v1114, %v1114
          %v1153 = vmul.f32 %v1115, %v1115
          %v1154 = vmul.f32 %v1116, %v1116
          %v1155 = vmul.f32 %v1117, %v1117
          %v1156 = vmul.f32 %v1118, %v1118
          %v1157 = vmul.f32 %v1119, %v1119
          %v1158 = vadd.f32 %v1142, %v1143
          %v1159 = vadd.f32 %v1158, %v1144
          %v1160 = vadd.f32 %v1159, %v1145
          %v1161 = vadd.f32 %v1160, %v1146
          %v1162 = vadd.f32 %v1161, %v1147
          %v1163 = vadd.f32 %v1162, %v1148
          %v1164 = vadd.f32 %v1163, %v1149
          %v1165 = vadd.f32 %v1164, %v1150
          %v1166 = vadd.f32 %v1165, %v1151
          %v1167 = vadd.f32 %v1166, %v1152
          %v1168 = vadd.f32 %v1167, %v1153
          %v1169 = vadd.f32 %v1168, %v1154
          %v1170 = vadd.f32 %v1169, %v1155
          %v1171 = vadd.f32 %v1170, %v1156
          %v1172 = vadd.f32 %v1171, %v1157
          %v1173 = vrot.slane %v1172, 4
          %v1174 = vadd.f32 %v1172, %v1173
          %v1175 = vrot.slane %v1174, 2
          %v1176 = vadd.f32 %v1174, %v1175
          %v1177 = vrot.slane %v1176, 1
          %v1178 = vadd.f32 %v1176, %v1177
          %1179 = vst [vmem:[%s486] sm:$0x1] %v1178
        $region76: #{tpu_custom_call.1} parent=51 // pred_fallthru
          _
        %s1180 = sand.u32 %s235, 1
        %s1181 = scalar_lea.sflag [#allocation5], %s1180
        %s1182 = sand.u32 %s235, 1
        %s1183 = smul.addr %s1182, 128
        %s1184 = scalar_lea.vmem [#allocation11], %s1183
        %s1185 = sand.u32 %s35, 1
        %s1186 = scalar_lea.sflag [#allocation13], %s1185
        %s1187 = sand.u32 %s261, 1
        %s1188 = scalar_lea.vmem [#allocation12], %s1187
        %s1189 = sand.u32 %s35, 1
        %s1190 = scalar_lea.sflag [#allocation13], %s1189
        %s1191 = sand.u32 %s287, 1
        %s1192 = scalar_lea.vmem [#allocation14], %s1191
        // Predicated region
        $region77: #{tpu_custom_call.1} parent=51 // pred_check
          %p1193 = pneg %p245
        $region78: #{tpu_custom_call.1} parent=51 // pred_check_branch
          %1195 = sbr.rel (%p1193) target = $region80
        $region79: #{tpu_custom_call.1} parent=51 // pred_region
          %s1196 = smul.u32 16, %s39
          %1198 = vsyncadd %s1181, 0
          %s1199 = smul.addr %s1196, 8
          %s1200 = scalar_lea.hbm %s8, %s1199
          %s1201 = sshll.u32 %s1184, 4
          %s1202 = int_to_ptr.vmem [resolvable:$true] %s1201
          %s1203 = sshll.u32 %s1200, 4
          %s1204 = int_to_ptr.hbm [resolvable:$true] %s1203
          %1209 = dma.vmem_to_hbm [thread:$0]  %s1202, 2048, %s1204, %s1181, 128, 128, 8
        $region80: #{tpu_custom_call.1} parent=51 // pred_fallthru
          _
        // Predicated region
        $region81: #{tpu_custom_call.1} parent=51 // pred_check
          %p1210 = pneg %p271
        $region82: #{tpu_custom_call.1} parent=51 // pred_check_branch
          %1212 = sbr.rel (%p1210) target = $region84
        $region83: #{tpu_custom_call.1} parent=51 // pred_region
          %1214 = vsyncadd %s1186, 0
          %s1215 = scalar_lea.hbm %s9, %s39
          %s1217 = sshll.u32 %s1188, 4
          %s1218 = int_to_ptr.vmem [resolvable:$true] %s1217
          %s1219 = sshll.u32 %s1215, 4
          %s1220 = int_to_ptr.hbm [resolvable:$true] %s1219
          %1222 = dma.vmem_to_hbm [thread:$0]  %s1218, 16, %s1220, %s1186
        $region84: #{tpu_custom_call.1} parent=51 // pred_fallthru
          _
        // Predicated region
        $region85: #{tpu_custom_call.1} parent=51 // pred_check
          %p1223 = pneg %p297
        $region86: #{tpu_custom_call.1} parent=51 // pred_check_branch
          %1225 = sbr.rel (%p1223) target = $region88
        $region87: #{tpu_custom_call.1} parent=51 // pred_region
          %1227 = vsyncadd %s1190, 0
          %s1228 = scalar_lea.hbm %s10, %s39
          %s1230 = sshll.u32 %s1192, 4
          %s1231 = int_to_ptr.vmem [resolvable:$true] %s1230
          %s1232 = sshll.u32 %s1228, 4
          %s1233 = int_to_ptr.hbm [resolvable:$true] %s1232
          %1235 = dma.vmem_to_hbm [thread:$0]  %s1231, 16, %s1233, %s1190
        $region88: #{tpu_custom_call.1} parent=51 // pred_fallthru
          _
      $region52: #{tpu_custom_call.1} parent=5 // pred_fallthru
        _
      %p1236 = scmp.le.s32.totalorder 2, %s30
      // Predicated region
      $region89: #{tpu_custom_call.1} parent=5 // pred_check
        %p1237 = pneg %p1236
      $region90: #{tpu_custom_call.1} parent=5 // pred_check_branch
        %1239 = sbr.rel (%p1237) target = $region92
      $region91: #{tpu_custom_call.1} parent=5 // pred_region
        %s1240 = ssub.s32 %s30, 2
        // Predicated region
        $region93: #{tpu_custom_call.1} parent=91 // pred_check
          %p1241 = pneg %p251
        $region94: #{tpu_custom_call.1} parent=91 // pred_check_branch
          %1243 = sbr.rel (%p1241) target = $region96
        $region95: #{tpu_custom_call.1} parent=91 // pred_region
          %s1244 = sand.u32 %s236, 1
          %s1245 = scalar_lea.sflag [#allocation5], %s1244
          %s1246 = sand.u32 %s236, 1
          %s1247 = smul.addr %s1246, 128
          %s1248 = scalar_lea.vmem [#allocation11], %s1247
          %1250 = dma.done %s1245, 2048
        $region96: #{tpu_custom_call.1} parent=91 // pred_fallthru
          _
        // Predicated region
        $region97: #{tpu_custom_call.1} parent=91 // pred_check
          %p1251 = pneg %p277
        $region98: #{tpu_custom_call.1} parent=91 // pred_check_branch
          %1253 = sbr.rel (%p1251) target = $region100
        $region99: #{tpu_custom_call.1} parent=91 // pred_region
          %s1254 = sand.u32 %s36, 1
          %s1255 = scalar_lea.sflag [#allocation13], %s1254
          %s1256 = sand.u32 %s262, 1
          %s1257 = scalar_lea.vmem [#allocation12], %s1256
          %1259 = dma.done %s1255, 16
        $region100: #{tpu_custom_call.1} parent=91 // pred_fallthru
          _
        // Predicated region
        $region101: #{tpu_custom_call.1} parent=91 // pred_check
          %p1260 = pneg %p303
        $region102: #{tpu_custom_call.1} parent=91 // pred_check_branch
          %1262 = sbr.rel (%p1260) target = $region104
        $region103: #{tpu_custom_call.1} parent=91 // pred_region
          %s1263 = sand.u32 %s36, 1
          %s1264 = scalar_lea.sflag [#allocation13], %s1263
          %s1265 = sand.u32 %s288, 1
          %s1266 = scalar_lea.vmem [#allocation14], %s1265
          %1268 = dma.done %s1264, 16
        $region104: #{tpu_custom_call.1} parent=91 // pred_fallthru
          _
      $region92: #{tpu_custom_call.1} parent=5 // pred_fallthru
        _
    $region6: #{tpu_custom_call.1} parent=1 // loop_footer
      %s34 = sadd.s32 1, %s30
    $region7: #{tpu_custom_call.1} parent=1 // loop_footer_branch
      %29 = sbr.rel target = $region3
    $region8: #{tpu_custom_call.1} parent=1 // loop_exit
      _
    %1269 = vsyncpa [#allocation4], 1
    %s1270 = scalar_lea.sflag [#allocation4], 1
    %1271 = vsyncpa %s1270, 1
    %1272 = vsyncpa [#allocation7], 1
    %s1273 = scalar_lea.sflag [#allocation7], 1
    %1274 = vsyncpa %s1273, 1
    %1275 = vsyncpa [#allocation10], 1
    %1276 = vsyncpa [#allocation5], 1
    %s1277 = scalar_lea.sflag [#allocation5], 1
    %1278 = vsyncpa %s1277, 1
    %1279 = vsyncpa [#allocation13], 1
    %s1280 = scalar_lea.sflag [#allocation13], 1
    %1281 = vsyncpa %s1280, 1

</llo_original>
